<compile_context>
chip_gen: v5e
topology: v5e:2x2
jax: 0.10.0
libtpu: 0.0.40
codegen_flags: <defaults>
</compile_context>

<pallas_src>
import jax
import jax.numpy as jnp
from jax import lax
from jax.experimental import pallas as pl
from jax.experimental.pallas import tpu as pltpu

P = 128  # lane width of one gate slab


def maglev_rnn_kernel(x_ref, w0_ref, b0_ref, w1_ref, b1_ref, wfc_ref, bfc_ref,
                      out_ref):
    S, B, _ = x_ref.shape

    # Hoist the (1,4P) -> (B,4P) bias broadcasts out of the unrolled time loop
    # (JAX does not CSE broadcast_in_dim).
    b0 = jnp.broadcast_to(b0_ref[...], (B, 4 * P))
    b1 = jnp.broadcast_to(b1_ref[...], (B, 4 * P))

    def gate_math(pre, c):
        # pre: (B, 4P), 128-lane-aligned gate slabs in PyTorch order [i,f,g,o].
        # The 0.5 logistic pre-scale was folded into the i/f/o weight & bias
        # columns, so a SINGLE tanh over the whole tile yields every activation
        # (sigmoid(z) = 0.5*tanh(0.5 z) + 0.5).
        th = jnp.tanh(pre)
        i = 0.5 * th[:, 0:P] + 0.5
        f = 0.5 * th[:, P:2 * P] + 0.5
        g = th[:, 2 * P:3 * P]
        o = 0.5 * th[:, 3 * P:4 * P] + 0.5
        # Padded-lane invariant: where weight/bias columns are zero, pre == 0,
        # hence i=f=o=0.5 and g=0 there, so c_pad follows 0.5*c_pad and stays
        # exactly 0 ONLY because h/c start at zero (true for this module; if a
        # nonzero initial state is ever supported, re-mask the padded lanes).
        c_new = f * c + i * g
        h_new = o * jnp.tanh(c_new)
        return h_new, c_new

    # TODO(synk): further latency cut: pin w0/w1 in MXU staging registers across
    # the time loop (pltpu.matmul_push_rhs / matmul_acc_lhs / matmul_pop, one
    # MXU per layer) instead of re-issuing jnp.dot each step; jnp.dot kept here
    # for portability across v5e/v6e/v7x and compile safety.
    def step(t, carry):
        h1, c1, h2, c2 = carry

        # ---- layer 0: fused LHS = x_t (lanes [H,H+I), pre-placed) + h1
        #               (lanes [0,H)).  Plain vreg add, no scratch refs. ----
        lhs0 = x_ref[t] + h1
        g0 = jnp.dot(lhs0, w0_ref[...], preferred_element_type=jnp.float32) + b0
        h1, c1 = gate_math(g0, c1)

        # ---- layer 1: h1_new lives in lanes [0,H), h2 in lanes [H,2H) (its
        #               gate columns are offset by H), so again one add. ----
        lhs1 = h1 + h2
        g1 = jnp.dot(lhs1, w1_ref[...], preferred_element_type=jnp.float32) + b1
        h2, c2 = gate_math(g1, c2)

        return h1, c1, h2, c2

    zeros = jnp.zeros((B, P), jnp.float32)
    _, _, h2, _ = lax.fori_loop(0, S, step, (zeros, zeros, zeros, zeros),
                                unroll=True)

    # FC head on the last timestep's layer-2 hidden state: VPU multiply + lane
    # reduction (avoids swapping a (128,1) RHS into the MXU at the very end).
    w = jnp.broadcast_to(wfc_ref[...], (B, P))
    out_ref[...] = jnp.sum(h2 * w, axis=-1, keepdims=True) + bfc_ref[0, 0]


def _fused_layer_weights(w_x, w_h, b_x, b_h, H, in_dim, x_rows, h_rows, col_off):
    """Build the (128, 4*128) fused gate weight and (1, 4*128) bias for a layer.

    Rows [x_rows, x_rows+in_dim) take the input part, rows [h_rows, h_rows+H)
    the recurrent part.  Gate g's columns live at [g*128+col_off, g*128+col_off+H);
    the 0.5 logistic pre-scale is folded into the i/f/o columns and bias so the
    kernel can use a single tanh per cell."""
    wxT = jnp.asarray(w_x, jnp.float32).T          # (in_dim, 4H)
    whT = jnp.asarray(w_h, jnp.float32).T          # (H, 4H)
    bias = jnp.asarray(b_x, jnp.float32) + jnp.asarray(b_h, jnp.float32)  # (4H,)
    W = jnp.zeros((P, 4 * P), jnp.float32)
    b = jnp.zeros((1, 4 * P), jnp.float32)
    for g, scale in enumerate((0.5, 0.5, 1.0, 0.5)):   # i, f, g, o
        cols = slice(g * P + col_off, g * P + col_off + H)
        W = W.at[x_rows:x_rows + in_dim, cols].set(scale * wxT[:, g * H:(g + 1) * H])
        W = W.at[h_rows:h_rows + H, cols].set(scale * whT[:, g * H:(g + 1) * H])
        b = b.at[0, cols].set(scale * bias[g * H:(g + 1) * H])
    return W, b


def maglev_rnn_forward(x, params):
    """x: (B, S, I) float32, batch_first — same layout as the PyTorch module."""
    B, S, I = x.shape
    H = params["whh0"].shape[1]
    assert 2 * H <= P and H + I <= P

    # Time-major, lane-padded input: x_t lives in lanes [H, H+I) so that
    # lhs0 = x_pad[t] + h1 (h1 in lanes [0,H)) needs no in-kernel relayout.
    # This touches S*B*I floats on the host side -> free.
    x_pad = jnp.zeros((S, B, P), jnp.float32)
    x_pad = x_pad.at[:, :, H:H + I].set(
        jnp.transpose(jnp.asarray(x, jnp.float32), (1, 0, 2)))

    w0, b0 = _fused_layer_weights(params["wih0"], params["whh0"],
                                  params["bih0"], params["bhh0"],
                                  H, I, x_rows=H, h_rows=0, col_off=0)
    w1, b1 = _fused_layer_weights(params["wih1"], params["whh1"],
                                  params["bih1"], params["bhh1"],
                                  H, H, x_rows=0, h_rows=H, col_off=H)
    wfc = jnp.zeros((1, P), jnp.float32).at[0, H:2 * H].set(
        jnp.asarray(params["wfc"], jnp.float32)[0])
    bfc = jnp.asarray(params["bfc"], jnp.float32).reshape(1, 1)

    grid_spec = pltpu.PrefetchScalarGridSpec(
        num_scalar_prefetch=0,
        grid=(1,),                                             # whole seq, one step
        in_specs=[
            pl.BlockSpec((S, B, P), lambda i: (0, 0, 0)),      # x (time-major, padded)
            pl.BlockSpec((P, 4 * P), lambda i: (0, 0)),        # fused W layer 0
            pl.BlockSpec((1, 4 * P), lambda i: (0, 0)),        # slabbed bias 0
            pl.BlockSpec((P, 4 * P), lambda i: (0, 0)),        # fused W layer 1
            pl.BlockSpec((1, 4 * P), lambda i: (0, 0)),        # slabbed bias 1
            pl.BlockSpec((1, P), lambda i: (0, 0)),            # fc weight row
            pl.BlockSpec(memory_space=pltpu.MemorySpace.SMEM), # fc bias scalar
        ],
        out_specs=pl.BlockSpec((B, 1), lambda i: (0, 0)),
    )

    out = pl.pallas_call(
        maglev_rnn_kernel,
        out_shape=jax.ShapeDtypeStruct((B, 1), jnp.float32),
        grid_spec=grid_spec,
        compiler_params=pltpu.CompilerParams(
            dimension_semantics=("arbitrary",)),
    )(x_pad, w0, b0, w1, b1, wfc, bfc)

    return jnp.squeeze(out)      # matches torch `.squeeze()`


def init_params(key, input_size=4, hidden_size=32):
    """Deterministic init matching the PyTorch shapes (U(-1/sqrt(H), 1/sqrt(H)))."""
    H, I = hidden_size, input_size
    k = 1.0 / float(H) ** 0.5
    ks = jax.random.split(key, 10)

    def u(kk, shape):
        return jax.random.uniform(kk, shape, jnp.float32, -k, k)

    return dict(
        wih0=u(ks[0], (4 * H, I)),
        whh0=u(ks[1], (4 * H, H)),
        bih0=u(ks[2], (4 * H,)),
        bhh0=u(ks[3], (4 * H,)),
        wih1=u(ks[4], (4 * H, H)),
        whh1=u(ks[5], (4 * H, H)),
        bih1=u(ks[6], (4 * H,)),
        bhh1=u(ks[7], (4 * H,)),
        wfc=u(ks[8], (1, H)),
        bfc=u(ks[9], (1,)),
    )


def reference_forward(x, params):
    """Pure-JAX reference of the PyTorch semantics (for a correctness check)."""
    B, S, _ = x.shape
    H = params["whh0"].shape[1]

    def cell(x_t, h, c, wih, whh, b):
        gates = x_t @ wih.T + h @ whh.T + b
        i = jax.nn.sigmoid(gates[:, :H])
        f = jax.nn.sigmoid(gates[:, H:2 * H])
        g = jnp.tanh(gates[:, 2 * H:3 * H])
        o = jax.nn.sigmoid(gates[:, 3 * H:])
        c = f * c + i * g
        h = o * jnp.tanh(c)
        return h, c

    h1 = c1 = h2 = c2 = jnp.zeros((B, H), jnp.float32)
    b0 = params["bih0"] + params["bhh0"]
    b1 = params["bih1"] + params["bhh1"]
    for t in range(S):
        h1, c1 = cell(x[:, t], h1, c1, params["wih0"], params["whh0"], b0)
        h2, c2 = cell(h1, h2, c2, params["wih1"], params["whh1"], b1)
    out = h2 @ params["wfc"].T + params["bfc"]
    return jnp.squeeze(out)


if __name__ == "__main__":
    B, S, I, H = 2, 8, 4, 32
    key = jax.random.PRNGKey(0)
    kp, kx = jax.random.split(key)
    params = init_params(kp, input_size=I, hidden_size=H)
    x = jax.random.normal(kx, (B, S, I), jnp.float32)

    out = maglev_rnn_forward(x, params)
    out = jax.block_until_ready(out)

    ref = reference_forward(x, params)
    assert out.shape == (B,), out.shape
    assert jnp.allclose(out, ref, atol=1e-4, rtol=1e-4), (out, ref)
    print("KERNEL_OK")
</pallas_src>

<mosaic_0001>
module attributes {stable_mosaic.version = 11 : i64} {
  func.func @maglev_rnn_kernel(%arg0: i32, %arg1: memref<8x2x128xf32, #tpu.memory_space<vmem>>, %arg2: memref<128x512xf32, #tpu.memory_space<vmem>>, %arg3: memref<1x512xf32, #tpu.memory_space<vmem>>, %arg4: memref<128x512xf32, #tpu.memory_space<vmem>>, %arg5: memref<1x512xf32, #tpu.memory_space<vmem>>, %arg6: memref<1x128xf32, #tpu.memory_space<vmem>>, %arg7: memref<1x1xf32, #tpu.memory_space<smem>>, %arg8: memref<2x1xf32, #tpu.memory_space<vmem>>) attributes {dimension_semantics = [#tpu.dimension_semantics<arbitrary>], iteration_bounds = array<i64: 1>, scalar_prefetch = 0 : i64, scratch_operands = 0 : i64, tpu.core_type = #tpu.core_type<tc>, window_params = [{pipeline_mode = #tpu.pipeline_mode<synchronous>, transform_indices = @transform_0, window_bounds = array<i64: 8, 2, 128>}, {pipeline_mode = #tpu.pipeline_mode<synchronous>, transform_indices = @transform_1, window_bounds = array<i64: 128, 512>}, {pipeline_mode = #tpu.pipeline_mode<synchronous>, transform_indices = @transform_2, window_bounds = array<i64: 1, 512>}, {pipeline_mode = #tpu.pipeline_mode<synchronous>, transform_indices = @transform_3, window_bounds = array<i64: 128, 512>}, {pipeline_mode = #tpu.pipeline_mode<synchronous>, transform_indices = @transform_4, window_bounds = array<i64: 1, 512>}, {pipeline_mode = #tpu.pipeline_mode<synchronous>, transform_indices = @transform_5, window_bounds = array<i64: 1, 128>}, {transform_indices = @transform_6, window_bounds = array<i64: 1, 1>}, {pipeline_mode = #tpu.pipeline_mode<synchronous>, transform_indices = @transform_7, window_bounds = array<i64: 2, 1>}]} {
    %c0 = arith.constant 0 : index
    %c0_0 = arith.constant 0 : index
    %0 = vector.load %arg3[%c0, %c0_0] : memref<1x512xf32, #tpu.memory_space<vmem>>, vector<1x512xf32>
    %1 = vector.shape_cast %0 : vector<1x512xf32> to vector<1x512xf32>
    %2 = vector.broadcast %1 : vector<1x512xf32> to vector<2x512xf32>
    %c0_1 = arith.constant 0 : index
    %c0_2 = arith.constant 0 : index
    %3 = vector.load %arg5[%c0_1, %c0_2] : memref<1x512xf32, #tpu.memory_space<vmem>>, vector<1x512xf32>
    %4 = vector.shape_cast %3 : vector<1x512xf32> to vector<1x512xf32>
    %5 = vector.broadcast %4 : vector<1x512xf32> to vector<2x512xf32>
    %cst = arith.constant 0.000000e+00 : f32
    %6 = vector.broadcast %cst : f32 to vector<2x128xf32>
    %c0_i32 = arith.constant 0 : i32
    %7 = arith.index_cast %c0_i32 : i32 to index
    %c0_3 = arith.constant 0 : index
    %c0_4 = arith.constant 0 : index
    %8 = vector.load %arg1[%7, %c0_3, %c0_4] : memref<8x2x128xf32, #tpu.memory_space<vmem>>, vector<1x2x128xf32>
    %9 = vector.shape_cast %8 : vector<1x2x128xf32> to vector<2x128xf32>
    %10 = arith.addf %9, %6 : vector<2x128xf32>
    %c0_5 = arith.constant 0 : index
    %c0_6 = arith.constant 0 : index
    %11 = vector.load %arg2[%c0_5, %c0_6] : memref<128x512xf32, #tpu.memory_space<vmem>>, vector<128x512xf32>
    %cst_7 = arith.constant dense<0.000000e+00> : vector<2x512xf32>
    %12 = tpu.matmul %10, %11, %cst_7 {dimension_numbers = #tpu.dot_dimension_numbers<[1], [0], [0], [1], [0, 0, 1, 1], [], []>} : vector<2x128xf32>, vector<128x512xf32>, vector<2x512xf32> -> vector<2x512xf32>
    %13 = arith.addf %12, %2 : vector<2x512xf32>
    %14 = math.tanh %13 : vector<2x512xf32>
    %15 = vector.extract_strided_slice %14 {offsets = [0, 0], sizes = [2, 128], strides = [1, 1]} : vector<2x512xf32> to vector<2x128xf32>
    %cst_8 = arith.constant 5.000000e-01 : f32
    %16 = vector.broadcast %cst_8 : f32 to vector<2x128xf32>
    %17 = arith.mulf %16, %15 : vector<2x128xf32>
    %cst_9 = arith.constant 5.000000e-01 : f32
    %18 = vector.broadcast %cst_9 : f32 to vector<2x128xf32>
    %19 = arith.addf %17, %18 : vector<2x128xf32>
    %20 = vector.extract_strided_slice %14 {offsets = [0, 128], sizes = [2, 128], strides = [1, 1]} : vector<2x512xf32> to vector<2x128xf32>
    %cst_10 = arith.constant 5.000000e-01 : f32
    %21 = vector.broadcast %cst_10 : f32 to vector<2x128xf32>
    %22 = arith.mulf %21, %20 : vector<2x128xf32>
    %cst_11 = arith.constant 5.000000e-01 : f32
    %23 = vector.broadcast %cst_11 : f32 to vector<2x128xf32>
    %24 = arith.addf %22, %23 : vector<2x128xf32>
    %25 = vector.extract_strided_slice %14 {offsets = [0, 256], sizes = [2, 128], strides = [1, 1]} : vector<2x512xf32> to vector<2x128xf32>
    %26 = vector.extract_strided_slice %14 {offsets = [0, 384], sizes = [2, 128], strides = [1, 1]} : vector<2x512xf32> to vector<2x128xf32>
    %cst_12 = arith.constant 5.000000e-01 : f32
    %27 = vector.broadcast %cst_12 : f32 to vector<2x128xf32>
    %28 = arith.mulf %27, %26 : vector<2x128xf32>
    %cst_13 = arith.constant 5.000000e-01 : f32
    %29 = vector.broadcast %cst_13 : f32 to vector<2x128xf32>
    %30 = arith.addf %28, %29 : vector<2x128xf32>
    %31 = arith.mulf %24, %6 : vector<2x128xf32>
    %32 = arith.mulf %19, %25 : vector<2x128xf32>
    %33 = arith.addf %31, %32 : vector<2x128xf32>
    %34 = math.tanh %33 : vector<2x128xf32>
    %35 = arith.mulf %30, %34 : vector<2x128xf32>
    %36 = arith.addf %35, %6 : vector<2x128xf32>
    %c0_14 = arith.constant 0 : index
    %c0_15 = arith.constant 0 : index
    %37 = vector.load %arg4[%c0_14, %c0_15] : memref<128x512xf32, #tpu.memory_space<vmem>>, vector<128x512xf32>
    %cst_16 = arith.constant dense<0.000000e+00> : vector<2x512xf32>
    %38 = tpu.matmul %36, %37, %cst_16 {dimension_numbers = #tpu.dot_dimension_numbers<[1], [0], [0], [1], [0, 0, 1, 1], [], []>} : vector<2x128xf32>, vector<128x512xf32>, vector<2x512xf32> -> vector<2x512xf32>
    %39 = arith.addf %38, %5 : vector<2x512xf32>
    %40 = math.tanh %39 : vector<2x512xf32>
    %41 = vector.extract_strided_slice %40 {offsets = [0, 0], sizes = [2, 128], strides = [1, 1]} : vector<2x512xf32> to vector<2x128xf32>
    %cst_17 = arith.constant 5.000000e-01 : f32
    %42 = vector.broadcast %cst_17 : f32 to vector<2x128xf32>
    %43 = arith.mulf %42, %41 : vector<2x128xf32>
    %cst_18 = arith.constant 5.000000e-01 : f32
    %44 = vector.broadcast %cst_18 : f32 to vector<2x128xf32>
    %45 = arith.addf %43, %44 : vector<2x128xf32>
    %46 = vector.extract_strided_slice %40 {offsets = [0, 128], sizes = [2, 128], strides = [1, 1]} : vector<2x512xf32> to vector<2x128xf32>
    %cst_19 = arith.constant 5.000000e-01 : f32
    %47 = vector.broadcast %cst_19 : f32 to vector<2x128xf32>
    %48 = arith.mulf %47, %46 : vector<2x128xf32>
    %cst_20 = arith.constant 5.000000e-01 : f32
    %49 = vector.broadcast %cst_20 : f32 to vector<2x128xf32>
    %50 = arith.addf %48, %49 : vector<2x128xf32>
    %51 = vector.extract_strided_slice %40 {offsets = [0, 256], sizes = [2, 128], strides = [1, 1]} : vector<2x512xf32> to vector<2x128xf32>
    %52 = vector.extract_strided_slice %40 {offsets = [0, 384], sizes = [2, 128], strides = [1, 1]} : vector<2x512xf32> to vector<2x128xf32>
    %cst_21 = arith.constant 5.000000e-01 : f32
    %53 = vector.broadcast %cst_21 : f32 to vector<2x128xf32>
    %54 = arith.mulf %53, %52 : vector<2x128xf32>
    %cst_22 = arith.constant 5.000000e-01 : f32
    %55 = vector.broadcast %cst_22 : f32 to vector<2x128xf32>
    %56 = arith.addf %54, %55 : vector<2x128xf32>
    %57 = arith.mulf %50, %6 : vector<2x128xf32>
    %58 = arith.mulf %45, %51 : vector<2x128xf32>
    %59 = arith.addf %57, %58 : vector<2x128xf32>
    %60 = math.tanh %59 : vector<2x128xf32>
    %61 = arith.mulf %56, %60 : vector<2x128xf32>
    %c1_i32 = arith.constant 1 : i32
    %62 = arith.index_cast %c1_i32 : i32 to index
    %c0_23 = arith.constant 0 : index
    %c0_24 = arith.constant 0 : index
    %63 = vector.load %arg1[%62, %c0_23, %c0_24] : memref<8x2x128xf32, #tpu.memory_space<vmem>>, vector<1x2x128xf32>
    %64 = vector.shape_cast %63 : vector<1x2x128xf32> to vector<2x128xf32>
    %65 = arith.addf %64, %35 : vector<2x128xf32>
    %c0_25 = arith.constant 0 : index
    %c0_26 = arith.constant 0 : index
    %66 = vector.load %arg2[%c0_25, %c0_26] : memref<128x512xf32, #tpu.memory_space<vmem>>, vector<128x512xf32>
    %cst_27 = arith.constant dense<0.000000e+00> : vector<2x512xf32>
    %67 = tpu.matmul %65, %66, %cst_27 {dimension_numbers = #tpu.dot_dimension_numbers<[1], [0], [0], [1], [0, 0, 1, 1], [], []>} : vector<2x128xf32>, vector<128x512xf32>, vector<2x512xf32> -> vector<2x512xf32>
    %68 = arith.addf %67, %2 : vector<2x512xf32>
    %69 = math.tanh %68 : vector<2x512xf32>
    %70 = vector.extract_strided_slice %69 {offsets = [0, 0], sizes = [2, 128], strides = [1, 1]} : vector<2x512xf32> to vector<2x128xf32>
    %cst_28 = arith.constant 5.000000e-01 : f32
    %71 = vector.broadcast %cst_28 : f32 to vector<2x128xf32>
    %72 = arith.mulf %71, %70 : vector<2x128xf32>
    %cst_29 = arith.constant 5.000000e-01 : f32
    %73 = vector.broadcast %cst_29 : f32 to vector<2x128xf32>
    %74 = arith.addf %72, %73 : vector<2x128xf32>
    %75 = vector.extract_strided_slice %69 {offsets = [0, 128], sizes = [2, 128], strides = [1, 1]} : vector<2x512xf32> to vector<2x128xf32>
    %cst_30 = arith.constant 5.000000e-01 : f32
    %76 = vector.broadcast %cst_30 : f32 to vector<2x128xf32>
    %77 = arith.mulf %76, %75 : vector<2x128xf32>
    %cst_31 = arith.constant 5.000000e-01 : f32
    %78 = vector.broadcast %cst_31 : f32 to vector<2x128xf32>
    %79 = arith.addf %77, %78 : vector<2x128xf32>
    %80 = vector.extract_strided_slice %69 {offsets = [0, 256], sizes = [2, 128], strides = [1, 1]} : vector<2x512xf32> to vector<2x128xf32>
    %81 = vector.extract_strided_slice %69 {offsets = [0, 384], sizes = [2, 128], strides = [1, 1]} : vector<2x512xf32> to vector<2x128xf32>
    %cst_32 = arith.constant 5.000000e-01 : f32
    %82 = vector.broadcast %cst_32 : f32 to vector<2x128xf32>
    %83 = arith.mulf %82, %81 : vector<2x128xf32>
    %cst_33 = arith.constant 5.000000e-01 : f32
    %84 = vector.broadcast %cst_33 : f32 to vector<2x128xf32>
    %85 = arith.addf %83, %84 : vector<2x128xf32>
    %86 = arith.mulf %79, %33 : vector<2x128xf32>
    %87 = arith.mulf %74, %80 : vector<2x128xf32>
    %88 = arith.addf %86, %87 : vector<2x128xf32>
    %89 = math.tanh %88 : vector<2x128xf32>
    %90 = arith.mulf %85, %89 : vector<2x128xf32>
    %91 = arith.addf %90, %61 : vector<2x128xf32>
    %c0_34 = arith.constant 0 : index
    %c0_35 = arith.constant 0 : index
    %92 = vector.load %arg4[%c0_34, %c0_35] : memref<128x512xf32, #tpu.memory_space<vmem>>, vector<128x512xf32>
    %cst_36 = arith.constant dense<0.000000e+00> : vector<2x512xf32>
    %93 = tpu.matmul %91, %92, %cst_36 {dimension_numbers = #tpu.dot_dimension_numbers<[1], [0], [0], [1], [0, 0, 1, 1], [], []>} : vector<2x128xf32>, vector<128x512xf32>, vector<2x512xf32> -> vector<2x512xf32>
    %94 = arith.addf %93, %5 : vector<2x512xf32>
    %95 = math.tanh %94 : vector<2x512xf32>
    %96 = vector.extract_strided_slice %95 {offsets = [0, 0], sizes = [2, 128], strides = [1, 1]} : vector<2x512xf32> to vector<2x128xf32>
    %cst_37 = arith.constant 5.000000e-01 : f32
    %97 = vector.broadcast %cst_37 : f32 to vector<2x128xf32>
    %98 = arith.mulf %97, %96 : vector<2x128xf32>
    %cst_38 = arith.constant 5.000000e-01 : f32
    %99 = vector.broadcast %cst_38 : f32 to vector<2x128xf32>
    %100 = arith.addf %98, %99 : vector<2x128xf32>
    %101 = vector.extract_strided_slice %95 {offsets = [0, 128], sizes = [2, 128], strides = [1, 1]} : vector<2x512xf32> to vector<2x128xf32>
    %cst_39 = arith.constant 5.000000e-01 : f32
    %102 = vector.broadcast %cst_39 : f32 to vector<2x128xf32>
    %103 = arith.mulf %102, %101 : vector<2x128xf32>
    %cst_40 = arith.constant 5.000000e-01 : f32
    %104 = vector.broadcast %cst_40 : f32 to vector<2x128xf32>
    %105 = arith.addf %103, %104 : vector<2x128xf32>
    %106 = vector.extract_strided_slice %95 {offsets = [0, 256], sizes = [2, 128], strides = [1, 1]} : vector<2x512xf32> to vector<2x128xf32>
    %107 = vector.extract_strided_slice %95 {offsets = [0, 384], sizes = [2, 128], strides = [1, 1]} : vector<2x512xf32> to vector<2x128xf32>
    %cst_41 = arith.constant 5.000000e-01 : f32
    %108 = vector.broadcast %cst_41 : f32 to vector<2x128xf32>
    %109 = arith.mulf %108, %107 : vector<2x128xf32>
    %cst_42 = arith.constant 5.000000e-01 : f32
    %110 = vector.broadcast %cst_42 : f32 to vector<2x128xf32>
    %111 = arith.addf %109, %110 : vector<2x128xf32>
    %112 = arith.mulf %105, %59 : vector<2x128xf32>
    %113 = arith.mulf %100, %106 : vector<2x128xf32>
    %114 = arith.addf %112, %113 : vector<2x128xf32>
    %115 = math.tanh %114 : vector<2x128xf32>
    %116 = arith.mulf %111, %115 : vector<2x128xf32>
    %c2_i32 = arith.constant 2 : i32
    %117 = arith.index_cast %c2_i32 : i32 to index
    %c0_43 = arith.constant 0 : index
    %c0_44 = arith.constant 0 : index
    %118 = vector.load %arg1[%117, %c0_43, %c0_44] : memref<8x2x128xf32, #tpu.memory_space<vmem>>, vector<1x2x128xf32>
    %119 = vector.shape_cast %118 : vector<1x2x128xf32> to vector<2x128xf32>
    %120 = arith.addf %119, %90 : vector<2x128xf32>
    %c0_45 = arith.constant 0 : index
    %c0_46 = arith.constant 0 : index
    %121 = vector.load %arg2[%c0_45, %c0_46] : memref<128x512xf32, #tpu.memory_space<vmem>>, vector<128x512xf32>
    %cst_47 = arith.constant dense<0.000000e+00> : vector<2x512xf32>
    %122 = tpu.matmul %120, %121, %cst_47 {dimension_numbers = #tpu.dot_dimension_numbers<[1], [0], [0], [1], [0, 0, 1, 1], [], []>} : vector<2x128xf32>, vector<128x512xf32>, vector<2x512xf32> -> vector<2x512xf32>
    %123 = arith.addf %122, %2 : vector<2x512xf32>
    %124 = math.tanh %123 : vector<2x512xf32>
    %125 = vector.extract_strided_slice %124 {offsets = [0, 0], sizes = [2, 128], strides = [1, 1]} : vector<2x512xf32> to vector<2x128xf32>
    %cst_48 = arith.constant 5.000000e-01 : f32
    %126 = vector.broadcast %cst_48 : f32 to vector<2x128xf32>
    %127 = arith.mulf %126, %125 : vector<2x128xf32>
    %cst_49 = arith.constant 5.000000e-01 : f32
    %128 = vector.broadcast %cst_49 : f32 to vector<2x128xf32>
    %129 = arith.addf %127, %128 : vector<2x128xf32>
    %130 = vector.extract_strided_slice %124 {offsets = [0, 128], sizes = [2, 128], strides = [1, 1]} : vector<2x512xf32> to vector<2x128xf32>
    %cst_50 = arith.constant 5.000000e-01 : f32
    %131 = vector.broadcast %cst_50 : f32 to vector<2x128xf32>
    %132 = arith.mulf %131, %130 : vector<2x128xf32>
    %cst_51 = arith.constant 5.000000e-01 : f32
    %133 = vector.broadcast %cst_51 : f32 to vector<2x128xf32>
    %134 = arith.addf %132, %133 : vector<2x128xf32>
    %135 = vector.extract_strided_slice %124 {offsets = [0, 256], sizes = [2, 128], strides = [1, 1]} : vector<2x512xf32> to vector<2x128xf32>
    %136 = vector.extract_strided_slice %124 {offsets = [0, 384], sizes = [2, 128], strides = [1, 1]} : vector<2x512xf32> to vector<2x128xf32>
    %cst_52 = arith.constant 5.000000e-01 : f32
    %137 = vector.broadcast %cst_52 : f32 to vector<2x128xf32>
    %138 = arith.mulf %137, %136 : vector<2x128xf32>
    %cst_53 = arith.constant 5.000000e-01 : f32
    %139 = vector.broadcast %cst_53 : f32 to vector<2x128xf32>
    %140 = arith.addf %138, %139 : vector<2x128xf32>
    %141 = arith.mulf %134, %88 : vector<2x128xf32>
    %142 = arith.mulf %129, %135 : vector<2x128xf32>
    %143 = arith.addf %141, %142 : vector<2x128xf32>
    %144 = math.tanh %143 : vector<2x128xf32>
    %145 = arith.mulf %140, %144 : vector<2x128xf32>
    %146 = arith.addf %145, %116 : vector<2x128xf32>
    %c0_54 = arith.constant 0 : index
    %c0_55 = arith.constant 0 : index
    %147 = vector.load %arg4[%c0_54, %c0_55] : memref<128x512xf32, #tpu.memory_space<vmem>>, vector<128x512xf32>
    %cst_56 = arith.constant dense<0.000000e+00> : vector<2x512xf32>
    %148 = tpu.matmul %146, %147, %cst_56 {dimension_numbers = #tpu.dot_dimension_numbers<[1], [0], [0], [1], [0, 0, 1, 1], [], []>} : vector<2x128xf32>, vector<128x512xf32>, vector<2x512xf32> -> vector<2x512xf32>
    %149 = arith.addf %148, %5 : vector<2x512xf32>
    %150 = math.tanh %149 : vector<2x512xf32>
    %151 = vector.extract_strided_slice %150 {offsets = [0, 0], sizes = [2, 128], strides = [1, 1]} : vector<2x512xf32> to vector<2x128xf32>
    %cst_57 = arith.constant 5.000000e-01 : f32
    %152 = vector.broadcast %cst_57 : f32 to vector<2x128xf32>
    %153 = arith.mulf %152, %151 : vector<2x128xf32>
    %cst_58 = arith.constant 5.000000e-01 : f32
    %154 = vector.broadcast %cst_58 : f32 to vector<2x128xf32>
    %155 = arith.addf %153, %154 : vector<2x128xf32>
    %156 = vector.extract_strided_slice %150 {offsets = [0, 128], sizes = [2, 128], strides = [1, 1]} : vector<2x512xf32> to vector<2x128xf32>
    %cst_59 = arith.constant 5.000000e-01 : f32
    %157 = vector.broadcast %cst_59 : f32 to vector<2x128xf32>
    %158 = arith.mulf %157, %156 : vector<2x128xf32>
    %cst_60 = arith.constant 5.000000e-01 : f32
    %159 = vector.broadcast %cst_60 : f32 to vector<2x128xf32>
    %160 = arith.addf %158, %159 : vector<2x128xf32>
    %161 = vector.extract_strided_slice %150 {offsets = [0, 256], sizes = [2, 128], strides = [1, 1]} : vector<2x512xf32> to vector<2x128xf32>
    %162 = vector.extract_strided_slice %150 {offsets = [0, 384], sizes = [2, 128], strides = [1, 1]} : vector<2x512xf32> to vector<2x128xf32>
    %cst_61 = arith.constant 5.000000e-01 : f32
    %163 = vector.broadcast %cst_61 : f32 to vector<2x128xf32>
    %164 = arith.mulf %163, %162 : vector<2x128xf32>
    %cst_62 = arith.constant 5.000000e-01 : f32
    %165 = vector.broadcast %cst_62 : f32 to vector<2x128xf32>
    %166 = arith.addf %164, %165 : vector<2x128xf32>
    %167 = arith.mulf %160, %114 : vector<2x128xf32>
    %168 = arith.mulf %155, %161 : vector<2x128xf32>
    %169 = arith.addf %167, %168 : vector<2x128xf32>
    %170 = math.tanh %169 : vector<2x128xf32>
    %171 = arith.mulf %166, %170 : vector<2x128xf32>
    %c3_i32 = arith.constant 3 : i32
    %172 = arith.index_cast %c3_i32 : i32 to index
    %c0_63 = arith.constant 0 : index
    %c0_64 = arith.constant 0 : index
    %173 = vector.load %arg1[%172, %c0_63, %c0_64] : memref<8x2x128xf32, #tpu.memory_space<vmem>>, vector<1x2x128xf32>
    %174 = vector.shape_cast %173 : vector<1x2x128xf32> to vector<2x128xf32>
    %175 = arith.addf %174, %145 : vector<2x128xf32>
    %c0_65 = arith.constant 0 : index
    %c0_66 = arith.constant 0 : index
    %176 = vector.load %arg2[%c0_65, %c0_66] : memref<128x512xf32, #tpu.memory_space<vmem>>, vector<128x512xf32>
    %cst_67 = arith.constant dense<0.000000e+00> : vector<2x512xf32>
    %177 = tpu.matmul %175, %176, %cst_67 {dimension_numbers = #tpu.dot_dimension_numbers<[1], [0], [0], [1], [0, 0, 1, 1], [], []>} : vector<2x128xf32>, vector<128x512xf32>, vector<2x512xf32> -> vector<2x512xf32>
    %178 = arith.addf %177, %2 : vector<2x512xf32>
    %179 = math.tanh %178 : vector<2x512xf32>
    %180 = vector.extract_strided_slice %179 {offsets = [0, 0], sizes = [2, 128], strides = [1, 1]} : vector<2x512xf32> to vector<2x128xf32>
    %cst_68 = arith.constant 5.000000e-01 : f32
    %181 = vector.broadcast %cst_68 : f32 to vector<2x128xf32>
    %182 = arith.mulf %181, %180 : vector<2x128xf32>
    %cst_69 = arith.constant 5.000000e-01 : f32
    %183 = vector.broadcast %cst_69 : f32 to vector<2x128xf32>
    %184 = arith.addf %182, %183 : vector<2x128xf32>
    %185 = vector.extract_strided_slice %179 {offsets = [0, 128], sizes = [2, 128], strides = [1, 1]} : vector<2x512xf32> to vector<2x128xf32>
    %cst_70 = arith.constant 5.000000e-01 : f32
    %186 = vector.broadcast %cst_70 : f32 to vector<2x128xf32>
    %187 = arith.mulf %186, %185 : vector<2x128xf32>
    %cst_71 = arith.constant 5.000000e-01 : f32
    %188 = vector.broadcast %cst_71 : f32 to vector<2x128xf32>
    %189 = arith.addf %187, %188 : vector<2x128xf32>
    %190 = vector.extract_strided_slice %179 {offsets = [0, 256], sizes = [2, 128], strides = [1, 1]} : vector<2x512xf32> to vector<2x128xf32>
    %191 = vector.extract_strided_slice %179 {offsets = [0, 384], sizes = [2, 128], strides = [1, 1]} : vector<2x512xf32> to vector<2x128xf32>
    %cst_72 = arith.constant 5.000000e-01 : f32
    %192 = vector.broadcast %cst_72 : f32 to vector<2x128xf32>
    %193 = arith.mulf %192, %191 : vector<2x128xf32>
    %cst_73 = arith.constant 5.000000e-01 : f32
    %194 = vector.broadcast %cst_73 : f32 to vector<2x128xf32>
    %195 = arith.addf %193, %194 : vector<2x128xf32>
    %196 = arith.mulf %189, %143 : vector<2x128xf32>
    %197 = arith.mulf %184, %190 : vector<2x128xf32>
    %198 = arith.addf %196, %197 : vector<2x128xf32>
    %199 = math.tanh %198 : vector<2x128xf32>
    %200 = arith.mulf %195, %199 : vector<2x128xf32>
    %201 = arith.addf %200, %171 : vector<2x128xf32>
    %c0_74 = arith.constant 0 : index
    %c0_75 = arith.constant 0 : index
    %202 = vector.load %arg4[%c0_74, %c0_75] : memref<128x512xf32, #tpu.memory_space<vmem>>, vector<128x512xf32>
    %cst_76 = arith.constant dense<0.000000e+00> : vector<2x512xf32>
    %203 = tpu.matmul %201, %202, %cst_76 {dimension_numbers = #tpu.dot_dimension_numbers<[1], [0], [0], [1], [0, 0, 1, 1], [], []>} : vector<2x128xf32>, vector<128x512xf32>, vector<2x512xf32> -> vector<2x512xf32>
    %204 = arith.addf %203, %5 : vector<2x512xf32>
    %205 = math.tanh %204 : vector<2x512xf32>
    %206 = vector.extract_strided_slice %205 {offsets = [0, 0], sizes = [2, 128], strides = [1, 1]} : vector<2x512xf32> to vector<2x128xf32>
    %cst_77 = arith.constant 5.000000e-01 : f32
    %207 = vector.broadcast %cst_77 : f32 to vector<2x128xf32>
    %208 = arith.mulf %207, %206 : vector<2x128xf32>
    %cst_78 = arith.constant 5.000000e-01 : f32
    %209 = vector.broadcast %cst_78 : f32 to vector<2x128xf32>
    %210 = arith.addf %208, %209 : vector<2x128xf32>
    %211 = vector.extract_strided_slice %205 {offsets = [0, 128], sizes = [2, 128], strides = [1, 1]} : vector<2x512xf32> to vector<2x128xf32>
    %cst_79 = arith.constant 5.000000e-01 : f32
    %212 = vector.broadcast %cst_79 : f32 to vector<2x128xf32>
    %213 = arith.mulf %212, %211 : vector<2x128xf32>
    %cst_80 = arith.constant 5.000000e-01 : f32
    %214 = vector.broadcast %cst_80 : f32 to vector<2x128xf32>
    %215 = arith.addf %213, %214 : vector<2x128xf32>
    %216 = vector.extract_strided_slice %205 {offsets = [0, 256], sizes = [2, 128], strides = [1, 1]} : vector<2x512xf32> to vector<2x128xf32>
    %217 = vector.extract_strided_slice %205 {offsets = [0, 384], sizes = [2, 128], strides = [1, 1]} : vector<2x512xf32> to vector<2x128xf32>
    %cst_81 = arith.constant 5.000000e-01 : f32
    %218 = vector.broadcast %cst_81 : f32 to vector<2x128xf32>
    %219 = arith.mulf %218, %217 : vector<2x128xf32>
    %cst_82 = arith.constant 5.000000e-01 : f32
    %220 = vector.broadcast %cst_82 : f32 to vector<2x128xf32>
    %221 = arith.addf %219, %220 : vector<2x128xf32>
    %222 = arith.mulf %215, %169 : vector<2x128xf32>
    %223 = arith.mulf %210, %216 : vector<2x128xf32>
    %224 = arith.addf %222, %223 : vector<2x128xf32>
    %225 = math.tanh %224 : vector<2x128xf32>
    %226 = arith.mulf %221, %225 : vector<2x128xf32>
    %c4_i32 = arith.constant 4 : i32
    %227 = arith.index_cast %c4_i32 : i32 to index
    %c0_83 = arith.constant 0 : index
    %c0_84 = arith.constant 0 : index
    %228 = vector.load %arg1[%227, %c0_83, %c0_84] : memref<8x2x128xf32, #tpu.memory_space<vmem>>, vector<1x2x128xf32>
    %229 = vector.shape_cast %228 : vector<1x2x128xf32> to vector<2x128xf32>
    %230 = arith.addf %229, %200 : vector<2x128xf32>
    %c0_85 = arith.constant 0 : index
    %c0_86 = arith.constant 0 : index
    %231 = vector.load %arg2[%c0_85, %c0_86] : memref<128x512xf32, #tpu.memory_space<vmem>>, vector<128x512xf32>
    %cst_87 = arith.constant dense<0.000000e+00> : vector<2x512xf32>
    %232 = tpu.matmul %230, %231, %cst_87 {dimension_numbers = #tpu.dot_dimension_numbers<[1], [0], [0], [1], [0, 0, 1, 1], [], []>} : vector<2x128xf32>, vector<128x512xf32>, vector<2x512xf32> -> vector<2x512xf32>
    %233 = arith.addf %232, %2 : vector<2x512xf32>
    %234 = math.tanh %233 : vector<2x512xf32>
    %235 = vector.extract_strided_slice %234 {offsets = [0, 0], sizes = [2, 128], strides = [1, 1]} : vector<2x512xf32> to vector<2x128xf32>
    %cst_88 = arith.constant 5.000000e-01 : f32
    %236 = vector.broadcast %cst_88 : f32 to vector<2x128xf32>
    %237 = arith.mulf %236, %235 : vector<2x128xf32>
    %cst_89 = arith.constant 5.000000e-01 : f32
    %238 = vector.broadcast %cst_89 : f32 to vector<2x128xf32>
    %239 = arith.addf %237, %238 : vector<2x128xf32>
    %240 = vector.extract_strided_slice %234 {offsets = [0, 128], sizes = [2, 128], strides = [1, 1]} : vector<2x512xf32> to vector<2x128xf32>
    %cst_90 = arith.constant 5.000000e-01 : f32
    %241 = vector.broadcast %cst_90 : f32 to vector<2x128xf32>
    %242 = arith.mulf %241, %240 : vector<2x128xf32>
    %cst_91 = arith.constant 5.000000e-01 : f32
    %243 = vector.broadcast %cst_91 : f32 to vector<2x128xf32>
    %244 = arith.addf %242, %243 : vector<2x128xf32>
    %245 = vector.extract_strided_slice %234 {offsets = [0, 256], sizes = [2, 128], strides = [1, 1]} : vector<2x512xf32> to vector<2x128xf32>
    %246 = vector.extract_strided_slice %234 {offsets = [0, 384], sizes = [2, 128], strides = [1, 1]} : vector<2x512xf32> to vector<2x128xf32>
    %cst_92 = arith.constant 5.000000e-01 : f32
    %247 = vector.broadcast %cst_92 : f32 to vector<2x128xf32>
    %248 = arith.mulf %247, %246 : vector<2x128xf32>
    %cst_93 = arith.constant 5.000000e-01 : f32
    %249 = vector.broadcast %cst_93 : f32 to vector<2x128xf32>
    %250 = arith.addf %248, %249 : vector<2x128xf32>
    %251 = arith.mulf %244, %198 : vector<2x128xf32>
    %252 = arith.mulf %239, %245 : vector<2x128xf32>
    %253 = arith.addf %251, %252 : vector<2x128xf32>
    %254 = math.tanh %253 : vector<2x128xf32>
    %255 = arith.mulf %250, %254 : vector<2x128xf32>
    %256 = arith.addf %255, %226 : vector<2x128xf32>
    %c0_94 = arith.constant 0 : index
    %c0_95 = arith.constant 0 : index
    %257 = vector.load %arg4[%c0_94, %c0_95] : memref<128x512xf32, #tpu.memory_space<vmem>>, vector<128x512xf32>
    %cst_96 = arith.constant dense<0.000000e+00> : vector<2x512xf32>
    %258 = tpu.matmul %256, %257, %cst_96 {dimension_numbers = #tpu.dot_dimension_numbers<[1], [0], [0], [1], [0, 0, 1, 1], [], []>} : vector<2x128xf32>, vector<128x512xf32>, vector<2x512xf32> -> vector<2x512xf32>
    %259 = arith.addf %258, %5 : vector<2x512xf32>
    %260 = math.tanh %259 : vector<2x512xf32>
    %261 = vector.extract_strided_slice %260 {offsets = [0, 0], sizes = [2, 128], strides = [1, 1]} : vector<2x512xf32> to vector<2x128xf32>
    %cst_97 = arith.constant 5.000000e-01 : f32
    %262 = vector.broadcast %cst_97 : f32 to vector<2x128xf32>
    %263 = arith.mulf %262, %261 : vector<2x128xf32>
    %cst_98 = arith.constant 5.000000e-01 : f32
    %264 = vector.broadcast %cst_98 : f32 to vector<2x128xf32>
    %265 = arith.addf %263, %264 : vector<2x128xf32>
    %266 = vector.extract_strided_slice %260 {offsets = [0, 128], sizes = [2, 128], strides = [1, 1]} : vector<2x512xf32> to vector<2x128xf32>
    %cst_99 = arith.constant 5.000000e-01 : f32
    %267 = vector.broadcast %cst_99 : f32 to vector<2x128xf32>
    %268 = arith.mulf %267, %266 : vector<2x128xf32>
    %cst_100 = arith.constant 5.000000e-01 : f32
    %269 = vector.broadcast %cst_100 : f32 to vector<2x128xf32>
    %270 = arith.addf %268, %269 : vector<2x128xf32>
    %271 = vector.extract_strided_slice %260 {offsets = [0, 256], sizes = [2, 128], strides = [1, 1]} : vector<2x512xf32> to vector<2x128xf32>
    %272 = vector.extract_strided_slice %260 {offsets = [0, 384], sizes = [2, 128], strides = [1, 1]} : vector<2x512xf32> to vector<2x128xf32>
    %cst_101 = arith.constant 5.000000e-01 : f32
    %273 = vector.broadcast %cst_101 : f32 to vector<2x128xf32>
    %274 = arith.mulf %273, %272 : vector<2x128xf32>
    %cst_102 = arith.constant 5.000000e-01 : f32
    %275 = vector.broadcast %cst_102 : f32 to vector<2x128xf32>
    %276 = arith.addf %274, %275 : vector<2x128xf32>
    %277 = arith.mulf %270, %224 : vector<2x128xf32>
    %278 = arith.mulf %265, %271 : vector<2x128xf32>
    %279 = arith.addf %277, %278 : vector<2x128xf32>
    %280 = math.tanh %279 : vector<2x128xf32>
    %281 = arith.mulf %276, %280 : vector<2x128xf32>
    %c5_i32 = arith.constant 5 : i32
    %282 = arith.index_cast %c5_i32 : i32 to index
    %c0_103 = arith.constant 0 : index
    %c0_104 = arith.constant 0 : index
    %283 = vector.load %arg1[%282, %c0_103, %c0_104] : memref<8x2x128xf32, #tpu.memory_space<vmem>>, vector<1x2x128xf32>
    %284 = vector.shape_cast %283 : vector<1x2x128xf32> to vector<2x128xf32>
    %285 = arith.addf %284, %255 : vector<2x128xf32>
    %c0_105 = arith.constant 0 : index
    %c0_106 = arith.constant 0 : index
    %286 = vector.load %arg2[%c0_105, %c0_106] : memref<128x512xf32, #tpu.memory_space<vmem>>, vector<128x512xf32>
    %cst_107 = arith.constant dense<0.000000e+00> : vector<2x512xf32>
    %287 = tpu.matmul %285, %286, %cst_107 {dimension_numbers = #tpu.dot_dimension_numbers<[1], [0], [0], [1], [0, 0, 1, 1], [], []>} : vector<2x128xf32>, vector<128x512xf32>, vector<2x512xf32> -> vector<2x512xf32>
    %288 = arith.addf %287, %2 : vector<2x512xf32>
    %289 = math.tanh %288 : vector<2x512xf32>
    %290 = vector.extract_strided_slice %289 {offsets = [0, 0], sizes = [2, 128], strides = [1, 1]} : vector<2x512xf32> to vector<2x128xf32>
    %cst_108 = arith.constant 5.000000e-01 : f32
    %291 = vector.broadcast %cst_108 : f32 to vector<2x128xf32>
    %292 = arith.mulf %291, %290 : vector<2x128xf32>
    %cst_109 = arith.constant 5.000000e-01 : f32
    %293 = vector.broadcast %cst_109 : f32 to vector<2x128xf32>
    %294 = arith.addf %292, %293 : vector<2x128xf32>
    %295 = vector.extract_strided_slice %289 {offsets = [0, 128], sizes = [2, 128], strides = [1, 1]} : vector<2x512xf32> to vector<2x128xf32>
    %cst_110 = arith.constant 5.000000e-01 : f32
    %296 = vector.broadcast %cst_110 : f32 to vector<2x128xf32>
    %297 = arith.mulf %296, %295 : vector<2x128xf32>
    %cst_111 = arith.constant 5.000000e-01 : f32
    %298 = vector.broadcast %cst_111 : f32 to vector<2x128xf32>
    %299 = arith.addf %297, %298 : vector<2x128xf32>
    %300 = vector.extract_strided_slice %289 {offsets = [0, 256], sizes = [2, 128], strides = [1, 1]} : vector<2x512xf32> to vector<2x128xf32>
    %301 = vector.extract_strided_slice %289 {offsets = [0, 384], sizes = [2, 128], strides = [1, 1]} : vector<2x512xf32> to vector<2x128xf32>
    %cst_112 = arith.constant 5.000000e-01 : f32
    %302 = vector.broadcast %cst_112 : f32 to vector<2x128xf32>
    %303 = arith.mulf %302, %301 : vector<2x128xf32>
    %cst_113 = arith.constant 5.000000e-01 : f32
    %304 = vector.broadcast %cst_113 : f32 to vector<2x128xf32>
    %305 = arith.addf %303, %304 : vector<2x128xf32>
    %306 = arith.mulf %299, %253 : vector<2x128xf32>
    %307 = arith.mulf %294, %300 : vector<2x128xf32>
    %308 = arith.addf %306, %307 : vector<2x128xf32>
    %309 = math.tanh %308 : vector<2x128xf32>
    %310 = arith.mulf %305, %309 : vector<2x128xf32>
    %311 = arith.addf %310, %281 : vector<2x128xf32>
    %c0_114 = arith.constant 0 : index
    %c0_115 = arith.constant 0 : index
    %312 = vector.load %arg4[%c0_114, %c0_115] : memref<128x512xf32, #tpu.memory_space<vmem>>, vector<128x512xf32>
    %cst_116 = arith.constant dense<0.000000e+00> : vector<2x512xf32>
    %313 = tpu.matmul %311, %312, %cst_116 {dimension_numbers = #tpu.dot_dimension_numbers<[1], [0], [0], [1], [0, 0, 1, 1], [], []>} : vector<2x128xf32>, vector<128x512xf32>, vector<2x512xf32> -> vector<2x512xf32>
    %314 = arith.addf %313, %5 : vector<2x512xf32>
    %315 = math.tanh %314 : vector<2x512xf32>
    %316 = vector.extract_strided_slice %315 {offsets = [0, 0], sizes = [2, 128], strides = [1, 1]} : vector<2x512xf32> to vector<2x128xf32>
    %cst_117 = arith.constant 5.000000e-01 : f32
    %317 = vector.broadcast %cst_117 : f32 to vector<2x128xf32>
    %318 = arith.mulf %317, %316 : vector<2x128xf32>
    %cst_118 = arith.constant 5.000000e-01 : f32
    %319 = vector.broadcast %cst_118 : f32 to vector<2x128xf32>
    %320 = arith.addf %318, %319 : vector<2x128xf32>
    %321 = vector.extract_strided_slice %315 {offsets = [0, 128], sizes = [2, 128], strides = [1, 1]} : vector<2x512xf32> to vector<2x128xf32>
    %cst_119 = arith.constant 5.000000e-01 : f32
    %322 = vector.broadcast %cst_119 : f32 to vector<2x128xf32>
    %323 = arith.mulf %322, %321 : vector<2x128xf32>
    %cst_120 = arith.constant 5.000000e-01 : f32
    %324 = vector.broadcast %cst_120 : f32 to vector<2x128xf32>
    %325 = arith.addf %323, %324 : vector<2x128xf32>
    %326 = vector.extract_strided_slice %315 {offsets = [0, 256], sizes = [2, 128], strides = [1, 1]} : vector<2x512xf32> to vector<2x128xf32>
    %327 = vector.extract_strided_slice %315 {offsets = [0, 384], sizes = [2, 128], strides = [1, 1]} : vector<2x512xf32> to vector<2x128xf32>
    %cst_121 = arith.constant 5.000000e-01 : f32
    %328 = vector.broadcast %cst_121 : f32 to vector<2x128xf32>
    %329 = arith.mulf %328, %327 : vector<2x128xf32>
    %cst_122 = arith.constant 5.000000e-01 : f32
    %330 = vector.broadcast %cst_122 : f32 to vector<2x128xf32>
    %331 = arith.addf %329, %330 : vector<2x128xf32>
    %332 = arith.mulf %325, %279 : vector<2x128xf32>
    %333 = arith.mulf %320, %326 : vector<2x128xf32>
    %334 = arith.addf %332, %333 : vector<2x128xf32>
    %335 = math.tanh %334 : vector<2x128xf32>
    %336 = arith.mulf %331, %335 : vector<2x128xf32>
    %c6_i32 = arith.constant 6 : i32
    %337 = arith.index_cast %c6_i32 : i32 to index
    %c0_123 = arith.constant 0 : index
    %c0_124 = arith.constant 0 : index
    %338 = vector.load %arg1[%337, %c0_123, %c0_124] : memref<8x2x128xf32, #tpu.memory_space<vmem>>, vector<1x2x128xf32>
    %339 = vector.shape_cast %338 : vector<1x2x128xf32> to vector<2x128xf32>
    %340 = arith.addf %339, %310 : vector<2x128xf32>
    %c0_125 = arith.constant 0 : index
    %c0_126 = arith.constant 0 : index
    %341 = vector.load %arg2[%c0_125, %c0_126] : memref<128x512xf32, #tpu.memory_space<vmem>>, vector<128x512xf32>
    %cst_127 = arith.constant dense<0.000000e+00> : vector<2x512xf32>
    %342 = tpu.matmul %340, %341, %cst_127 {dimension_numbers = #tpu.dot_dimension_numbers<[1], [0], [0], [1], [0, 0, 1, 1], [], []>} : vector<2x128xf32>, vector<128x512xf32>, vector<2x512xf32> -> vector<2x512xf32>
    %343 = arith.addf %342, %2 : vector<2x512xf32>
    %344 = math.tanh %343 : vector<2x512xf32>
    %345 = vector.extract_strided_slice %344 {offsets = [0, 0], sizes = [2, 128], strides = [1, 1]} : vector<2x512xf32> to vector<2x128xf32>
    %cst_128 = arith.constant 5.000000e-01 : f32
    %346 = vector.broadcast %cst_128 : f32 to vector<2x128xf32>
    %347 = arith.mulf %346, %345 : vector<2x128xf32>
    %cst_129 = arith.constant 5.000000e-01 : f32
    %348 = vector.broadcast %cst_129 : f32 to vector<2x128xf32>
    %349 = arith.addf %347, %348 : vector<2x128xf32>
    %350 = vector.extract_strided_slice %344 {offsets = [0, 128], sizes = [2, 128], strides = [1, 1]} : vector<2x512xf32> to vector<2x128xf32>
    %cst_130 = arith.constant 5.000000e-01 : f32
    %351 = vector.broadcast %cst_130 : f32 to vector<2x128xf32>
    %352 = arith.mulf %351, %350 : vector<2x128xf32>
    %cst_131 = arith.constant 5.000000e-01 : f32
    %353 = vector.broadcast %cst_131 : f32 to vector<2x128xf32>
    %354 = arith.addf %352, %353 : vector<2x128xf32>
    %355 = vector.extract_strided_slice %344 {offsets = [0, 256], sizes = [2, 128], strides = [1, 1]} : vector<2x512xf32> to vector<2x128xf32>
    %356 = vector.extract_strided_slice %344 {offsets = [0, 384], sizes = [2, 128], strides = [1, 1]} : vector<2x512xf32> to vector<2x128xf32>
    %cst_132 = arith.constant 5.000000e-01 : f32
    %357 = vector.broadcast %cst_132 : f32 to vector<2x128xf32>
    %358 = arith.mulf %357, %356 : vector<2x128xf32>
    %cst_133 = arith.constant 5.000000e-01 : f32
    %359 = vector.broadcast %cst_133 : f32 to vector<2x128xf32>
    %360 = arith.addf %358, %359 : vector<2x128xf32>
    %361 = arith.mulf %354, %308 : vector<2x128xf32>
    %362 = arith.mulf %349, %355 : vector<2x128xf32>
    %363 = arith.addf %361, %362 : vector<2x128xf32>
    %364 = math.tanh %363 : vector<2x128xf32>
    %365 = arith.mulf %360, %364 : vector<2x128xf32>
    %366 = arith.addf %365, %336 : vector<2x128xf32>
    %c0_134 = arith.constant 0 : index
    %c0_135 = arith.constant 0 : index
    %367 = vector.load %arg4[%c0_134, %c0_135] : memref<128x512xf32, #tpu.memory_space<vmem>>, vector<128x512xf32>
    %cst_136 = arith.constant dense<0.000000e+00> : vector<2x512xf32>
    %368 = tpu.matmul %366, %367, %cst_136 {dimension_numbers = #tpu.dot_dimension_numbers<[1], [0], [0], [1], [0, 0, 1, 1], [], []>} : vector<2x128xf32>, vector<128x512xf32>, vector<2x512xf32> -> vector<2x512xf32>
    %369 = arith.addf %368, %5 : vector<2x512xf32>
    %370 = math.tanh %369 : vector<2x512xf32>
    %371 = vector.extract_strided_slice %370 {offsets = [0, 0], sizes = [2, 128], strides = [1, 1]} : vector<2x512xf32> to vector<2x128xf32>
    %cst_137 = arith.constant 5.000000e-01 : f32
    %372 = vector.broadcast %cst_137 : f32 to vector<2x128xf32>
    %373 = arith.mulf %372, %371 : vector<2x128xf32>
    %cst_138 = arith.constant 5.000000e-01 : f32
    %374 = vector.broadcast %cst_138 : f32 to vector<2x128xf32>
    %375 = arith.addf %373, %374 : vector<2x128xf32>
    %376 = vector.extract_strided_slice %370 {offsets = [0, 128], sizes = [2, 128], strides = [1, 1]} : vector<2x512xf32> to vector<2x128xf32>
    %cst_139 = arith.constant 5.000000e-01 : f32
    %377 = vector.broadcast %cst_139 : f32 to vector<2x128xf32>
    %378 = arith.mulf %377, %376 : vector<2x128xf32>
    %cst_140 = arith.constant 5.000000e-01 : f32
    %379 = vector.broadcast %cst_140 : f32 to vector<2x128xf32>
    %380 = arith.addf %378, %379 : vector<2x128xf32>
    %381 = vector.extract_strided_slice %370 {offsets = [0, 256], sizes = [2, 128], strides = [1, 1]} : vector<2x512xf32> to vector<2x128xf32>
    %382 = vector.extract_strided_slice %370 {offsets = [0, 384], sizes = [2, 128], strides = [1, 1]} : vector<2x512xf32> to vector<2x128xf32>
    %cst_141 = arith.constant 5.000000e-01 : f32
    %383 = vector.broadcast %cst_141 : f32 to vector<2x128xf32>
    %384 = arith.mulf %383, %382 : vector<2x128xf32>
    %cst_142 = arith.constant 5.000000e-01 : f32
    %385 = vector.broadcast %cst_142 : f32 to vector<2x128xf32>
    %386 = arith.addf %384, %385 : vector<2x128xf32>
    %387 = arith.mulf %380, %334 : vector<2x128xf32>
    %388 = arith.mulf %375, %381 : vector<2x128xf32>
    %389 = arith.addf %387, %388 : vector<2x128xf32>
    %390 = math.tanh %389 : vector<2x128xf32>
    %391 = arith.mulf %386, %390 : vector<2x128xf32>
    %c7_i32 = arith.constant 7 : i32
    %392 = arith.index_cast %c7_i32 : i32 to index
    %c0_143 = arith.constant 0 : index
    %c0_144 = arith.constant 0 : index
    %393 = vector.load %arg1[%392, %c0_143, %c0_144] : memref<8x2x128xf32, #tpu.memory_space<vmem>>, vector<1x2x128xf32>
    %394 = vector.shape_cast %393 : vector<1x2x128xf32> to vector<2x128xf32>
    %395 = arith.addf %394, %365 : vector<2x128xf32>
    %c0_145 = arith.constant 0 : index
    %c0_146 = arith.constant 0 : index
    %396 = vector.load %arg2[%c0_145, %c0_146] : memref<128x512xf32, #tpu.memory_space<vmem>>, vector<128x512xf32>
    %cst_147 = arith.constant dense<0.000000e+00> : vector<2x512xf32>
    %397 = tpu.matmul %395, %396, %cst_147 {dimension_numbers = #tpu.dot_dimension_numbers<[1], [0], [0], [1], [0, 0, 1, 1], [], []>} : vector<2x128xf32>, vector<128x512xf32>, vector<2x512xf32> -> vector<2x512xf32>
    %398 = arith.addf %397, %2 : vector<2x512xf32>
    %399 = math.tanh %398 : vector<2x512xf32>
    %400 = vector.extract_strided_slice %399 {offsets = [0, 0], sizes = [2, 128], strides = [1, 1]} : vector<2x512xf32> to vector<2x128xf32>
    %cst_148 = arith.constant 5.000000e-01 : f32
    %401 = vector.broadcast %cst_148 : f32 to vector<2x128xf32>
    %402 = arith.mulf %401, %400 : vector<2x128xf32>
    %cst_149 = arith.constant 5.000000e-01 : f32
    %403 = vector.broadcast %cst_149 : f32 to vector<2x128xf32>
    %404 = arith.addf %402, %403 : vector<2x128xf32>
    %405 = vector.extract_strided_slice %399 {offsets = [0, 128], sizes = [2, 128], strides = [1, 1]} : vector<2x512xf32> to vector<2x128xf32>
    %cst_150 = arith.constant 5.000000e-01 : f32
    %406 = vector.broadcast %cst_150 : f32 to vector<2x128xf32>
    %407 = arith.mulf %406, %405 : vector<2x128xf32>
    %cst_151 = arith.constant 5.000000e-01 : f32
    %408 = vector.broadcast %cst_151 : f32 to vector<2x128xf32>
    %409 = arith.addf %407, %408 : vector<2x128xf32>
    %410 = vector.extract_strided_slice %399 {offsets = [0, 256], sizes = [2, 128], strides = [1, 1]} : vector<2x512xf32> to vector<2x128xf32>
    %411 = vector.extract_strided_slice %399 {offsets = [0, 384], sizes = [2, 128], strides = [1, 1]} : vector<2x512xf32> to vector<2x128xf32>
    %cst_152 = arith.constant 5.000000e-01 : f32
    %412 = vector.broadcast %cst_152 : f32 to vector<2x128xf32>
    %413 = arith.mulf %412, %411 : vector<2x128xf32>
    %cst_153 = arith.constant 5.000000e-01 : f32
    %414 = vector.broadcast %cst_153 : f32 to vector<2x128xf32>
    %415 = arith.addf %413, %414 : vector<2x128xf32>
    %416 = arith.mulf %409, %363 : vector<2x128xf32>
    %417 = arith.mulf %404, %410 : vector<2x128xf32>
    %418 = arith.addf %416, %417 : vector<2x128xf32>
    %419 = math.tanh %418 : vector<2x128xf32>
    %420 = arith.mulf %415, %419 : vector<2x128xf32>
    %421 = arith.addf %420, %391 : vector<2x128xf32>
    %c0_154 = arith.constant 0 : index
    %c0_155 = arith.constant 0 : index
    %422 = vector.load %arg4[%c0_154, %c0_155] : memref<128x512xf32, #tpu.memory_space<vmem>>, vector<128x512xf32>
    %cst_156 = arith.constant dense<0.000000e+00> : vector<2x512xf32>
    %423 = tpu.matmul %421, %422, %cst_156 {dimension_numbers = #tpu.dot_dimension_numbers<[1], [0], [0], [1], [0, 0, 1, 1], [], []>} : vector<2x128xf32>, vector<128x512xf32>, vector<2x512xf32> -> vector<2x512xf32>
    %424 = arith.addf %423, %5 : vector<2x512xf32>
    %425 = math.tanh %424 : vector<2x512xf32>
    %426 = vector.extract_strided_slice %425 {offsets = [0, 0], sizes = [2, 128], strides = [1, 1]} : vector<2x512xf32> to vector<2x128xf32>
    %cst_157 = arith.constant 5.000000e-01 : f32
    %427 = vector.broadcast %cst_157 : f32 to vector<2x128xf32>
    %428 = arith.mulf %427, %426 : vector<2x128xf32>
    %cst_158 = arith.constant 5.000000e-01 : f32
    %429 = vector.broadcast %cst_158 : f32 to vector<2x128xf32>
    %430 = arith.addf %428, %429 : vector<2x128xf32>
    %431 = vector.extract_strided_slice %425 {offsets = [0, 128], sizes = [2, 128], strides = [1, 1]} : vector<2x512xf32> to vector<2x128xf32>
    %cst_159 = arith.constant 5.000000e-01 : f32
    %432 = vector.broadcast %cst_159 : f32 to vector<2x128xf32>
    %433 = arith.mulf %432, %431 : vector<2x128xf32>
    %cst_160 = arith.constant 5.000000e-01 : f32
    %434 = vector.broadcast %cst_160 : f32 to vector<2x128xf32>
    %435 = arith.addf %433, %434 : vector<2x128xf32>
    %436 = vector.extract_strided_slice %425 {offsets = [0, 256], sizes = [2, 128], strides = [1, 1]} : vector<2x512xf32> to vector<2x128xf32>
    %437 = vector.extract_strided_slice %425 {offsets = [0, 384], sizes = [2, 128], strides = [1, 1]} : vector<2x512xf32> to vector<2x128xf32>
    %cst_161 = arith.constant 5.000000e-01 : f32
    %438 = vector.broadcast %cst_161 : f32 to vector<2x128xf32>
    %439 = arith.mulf %438, %437 : vector<2x128xf32>
    %cst_162 = arith.constant 5.000000e-01 : f32
    %440 = vector.broadcast %cst_162 : f32 to vector<2x128xf32>
    %441 = arith.addf %439, %440 : vector<2x128xf32>
    %442 = arith.mulf %435, %389 : vector<2x128xf32>
    %443 = arith.mulf %430, %436 : vector<2x128xf32>
    %444 = arith.addf %442, %443 : vector<2x128xf32>
    %445 = math.tanh %444 : vector<2x128xf32>
    %446 = arith.mulf %441, %445 : vector<2x128xf32>
    %c8_i32 = arith.constant 8 : i32
    %c0_163 = arith.constant 0 : index
    %c0_164 = arith.constant 0 : index
    %447 = vector.load %arg6[%c0_163, %c0_164] : memref<1x128xf32, #tpu.memory_space<vmem>>, vector<1x128xf32>
    %448 = vector.shape_cast %447 : vector<1x128xf32> to vector<1x128xf32>
    %449 = vector.broadcast %448 : vector<1x128xf32> to vector<2x128xf32>
    %450 = arith.mulf %446, %449 : vector<2x128xf32>
    %cst_165 = arith.constant dense<0.000000e+00> : vector<2xf32>
    %451 = vector.multi_reduction <add>, %450, %cst_165 [1] : vector<2x128xf32> to vector<2xf32>
    %452 = vector.shape_cast %451 : vector<2xf32> to vector<2x1xf32>
    %c0_166 = arith.constant 0 : index
    %c0_167 = arith.constant 0 : index
    %453 = memref.load %arg7[%c0_166, %c0_167] : memref<1x1xf32, #tpu.memory_space<smem>>
    %454 = vector.broadcast %453 : f32 to vector<2x1xf32>
    %455 = arith.addf %452, %454 : vector<2x1xf32>
    %c0_168 = arith.constant 0 : index
    %c0_169 = arith.constant 0 : index
    %456 = vector.load %arg8[%c0_168, %c0_169] : memref<2x1xf32, #tpu.memory_space<vmem>>, vector<2x1xf32>
    tpu.vector_store %arg8[%c0_168, %c0_169], %455 {strides = array<i32>} : memref<2x1xf32, #tpu.memory_space<vmem>>, vector<2x1xf32>,
    return
  }
  func.func @transform_0(%arg0: i32) -> (i32, i32, i32) {
    %c0_i32 = arith.constant 0 : i32
    %c0_i32_0 = arith.constant 0 : i32
    %c0_i32_1 = arith.constant 0 : i32
    %c0_i32_2 = arith.constant 0 : i32
    return %c0_i32, %c0_i32_0, %c0_i32_1 : i32, i32, i32
  }
  func.func @transform_1(%arg0: i32) -> (i32, i32) {
    %c0_i32 = arith.constant 0 : i32
    %c0_i32_0 = arith.constant 0 : i32
    %c0_i32_1 = arith.constant 0 : i32
    return %c0_i32, %c0_i32_0 : i32, i32
  }
  func.func @transform_2(%arg0: i32) -> (i32, i32) {
    %c0_i32 = arith.constant 0 : i32
    %c0_i32_0 = arith.constant 0 : i32
    %c0_i32_1 = arith.constant 0 : i32
    return %c0_i32, %c0_i32_0 : i32, i32
  }
  func.func @transform_3(%arg0: i32) -> (i32, i32) {
    %c0_i32 = arith.constant 0 : i32
    %c0_i32_0 = arith.constant 0 : i32
    %c0_i32_1 = arith.constant 0 : i32
    return %c0_i32, %c0_i32_0 : i32, i32
  }
  func.func @transform_4(%arg0: i32) -> (i32, i32) {
    %c0_i32 = arith.constant 0 : i32
    %c0_i32_0 = arith.constant 0 : i32
    %c0_i32_1 = arith.constant 0 : i32
    return %c0_i32, %c0_i32_0 : i32, i32
  }
  func.func @transform_5(%arg0: i32) -> (i32, i32) {
    %c0_i32 = arith.constant 0 : i32
    %c0_i32_0 = arith.constant 0 : i32
    %c0_i32_1 = arith.constant 0 : i32
    return %c0_i32, %c0_i32_0 : i32, i32
  }
  func.func @transform_6(%arg0: i32) -> (i32, i32) {
    %c0_i32 = arith.constant 0 : i32
    %c0_i32_0 = arith.constant 0 : i32
    %c0_i32_1 = arith.constant 0 : i32
    return %c0_i32, %c0_i32_0 : i32, i32
  }
  func.func @transform_7(%arg0: i32) -> (i32, i32) {
    %c0_i32 = arith.constant 0 : i32
    %c0_i32_0 = arith.constant 0 : i32
    %c0_i32_1 = arith.constant 0 : i32
    return %c0_i32, %c0_i32_0 : i32, i32
  }
}

</mosaic_0001>

<llo_original>
// kernel: tpu_custom_call.1
$region0: #{tpu_custom_call.1}
  #allocation0 [shape = 'u32[]', space=smem, size = 0x4, offset = 0x4, fixed_abs, tag = 'smem constant byte address 0x4 - core index']
  #allocation1 [shape = 'u32[72,128]{1,0:T(1,128)}', space=vmem, size = 0x9000, scoped, tag = 'internal scratch']
  #allocation2 [shape = 'f32[1,1]{1,0:T(1,128)S(6)}', space=smem, size = 0x200, scoped, tag = 'scoped memory for tpu_custom_call.1']
  %s0 = inlined_call_operand.hbm [shape: f32[8,2,128], index: 0, kind: input, shape index: {}]
  %s1 = inlined_call_operand.hbm [shape: f32[128,512], index: 1, kind: input, shape index: {}]
  %s2 = inlined_call_operand.hbm [shape: f32[1,512], index: 2, kind: input, shape index: {}]
  %s3 = inlined_call_operand.hbm [shape: f32[128,512], index: 3, kind: input, shape index: {}]
  %s4 = inlined_call_operand.vmem [shape: f32[1,512], index: 4, kind: input, shape index: {}]
  %s5 = inlined_call_operand.vmem [shape: f32[1,128], index: 5, kind: input, shape index: {}]
  %s6 = inlined_call_operand.<no memory space> [shape: f32[1,1], index: 6, kind: input, shape index: {}]
  %s7 = inlined_call_operand.vmem [shape: f32[2,1], index: 7, kind: output, shape index: {}]
  %s8 = sld [smem:[#allocation0]]
  $region54: #{tpu_custom_call.1} parent=0
    _
  %s10 = ssub.s32 1, %s8
  %s11 = scalar_select 0, %s10, %s8
  %12 = sst [smem:[#allocation2]] %s6
  $region1: #{tpu_custom_call.1} parent=0
    #allocation3 [shape = 'u8[8192]{0}', space=vmem, size = 0x2000, scoped, tag = 'input window, operand 0, single buffered']
    #allocation4 [shape = 's32[1]{0}', space=sflag, size = 0x4, scoped, tag = 'scoped memory for tpu_custom_call.1']
    #allocation5 [shape = 'u8[262144]{0}', space=vmem, size = 0x40000, scoped, tag = 'input window, operand 1, single buffered']
    #allocation6 [shape = 's32[1]{0}', space=sflag, size = 0x4, scoped, tag = 'scoped memory for tpu_custom_call.1']
    #allocation7 [shape = 'u8[2048]{0}', space=vmem, size = 0x800, scoped, tag = 'input window, operand 2, single buffered']
    #allocation8 [shape = 'u8[262144]{0}', space=vmem, size = 0x40000, scoped, tag = 'input window, operand 3, single buffered']
    #allocation9 [shape = 's32[1]{0}', space=sflag, size = 0x4, scoped, tag = 'scoped memory for tpu_custom_call.1']
    %13 = vsyncpa [#allocation4], 0
    %14 = vsyncpa [#allocation6], 0
    %15 = vsyncpa [#allocation9], 0
    // Predicated region
    $region2: #{tpu_custom_call.1} parent=1 // pred_check
      _
    $region3: #{tpu_custom_call.1} parent=1 // pred_check_branch
      %17 = sbr.rel (0) target = $region5
    $region4: #{tpu_custom_call.1} parent=1 // pred_region
      %19 = vsyncadd [#allocation4], 0
      %s20 = sshll.u32 %s0, 4
      %s21 = int_to_ptr.hbm [resolvable:$true] %s20
      %s22 = sshll.u32 [#allocation3], 4
      %s23 = int_to_ptr.vmem [resolvable:$true] %s22
      %28 = dma.hbm_to_vmem [thread:$0]  %s21, 256, %s23, [#allocation4], 32, 32, 2
    $region5: #{tpu_custom_call.1} parent=1 // pred_fallthru
      _
    // Predicated region
    $region6: #{tpu_custom_call.1} parent=1 // pred_check
      _
    $region7: #{tpu_custom_call.1} parent=1 // pred_check_branch
      %30 = sbr.rel (0) target = $region9
    $region8: #{tpu_custom_call.1} parent=1 // pred_region
      %32 = vsyncadd [#allocation6], 0
      %s33 = sshll.u32 %s1, 4
      %s34 = int_to_ptr.hbm [resolvable:$true] %s33
      %s35 = sshll.u32 [#allocation5], 4
      %s36 = int_to_ptr.vmem [resolvable:$true] %s35
      %41 = dma.hbm_to_vmem [thread:$0]  %s34, 8192, %s36, [#allocation6], 512, 512, 32
    $region9: #{tpu_custom_call.1} parent=1 // pred_fallthru
      _
    // Predicated region
    $region10: #{tpu_custom_call.1} parent=1 // pred_check
      _
    $region11: #{tpu_custom_call.1} parent=1 // pred_check_branch
      %43 = sbr.rel (0) target = $region13
    $region12: #{tpu_custom_call.1} parent=1 // pred_region
      %45 = vsyncadd [#allocation6], 0
      %s47 = sshll.u32 %s2, 4
      %s48 = int_to_ptr.hbm [resolvable:$true] %s47
      %s49 = sshll.u32 [#allocation7], 4
      %s50 = int_to_ptr.vmem [resolvable:$true] %s49
      %52 = dma.hbm_to_vmem [thread:$0]  %s48, 64, %s50, [#allocation6]
    $region13: #{tpu_custom_call.1} parent=1 // pred_fallthru
      _
    // Predicated region
    $region14: #{tpu_custom_call.1} parent=1 // pred_check
      _
    $region15: #{tpu_custom_call.1} parent=1 // pred_check_branch
      %54 = sbr.rel (0) target = $region17
    $region16: #{tpu_custom_call.1} parent=1 // pred_region
      %56 = vsyncadd [#allocation9], 0
      %s57 = sshll.u32 %s3, 4
      %s58 = int_to_ptr.hbm [resolvable:$true] %s57
      %s59 = sshll.u32 [#allocation8], 4
      %s60 = int_to_ptr.vmem [resolvable:$true] %s59
      %65 = dma.hbm_to_vmem [thread:$0]  %s58, 8192, %s60, [#allocation9], 512, 512, 32
    $region17: #{tpu_custom_call.1} parent=1 // pred_fallthru
      _
    // Predicated region
    $region18: #{tpu_custom_call.1} parent=1 // pred_check
      _
    $region19: #{tpu_custom_call.1} parent=1 // pred_check_branch
      %67 = sbr.rel (0) target = $region21
    $region20: #{tpu_custom_call.1} parent=1 // pred_region
      _
    $region21: #{tpu_custom_call.1} parent=1 // pred_fallthru
      _
    // Predicated region
    $region22: #{tpu_custom_call.1} parent=1 // pred_check
      _
    $region23: #{tpu_custom_call.1} parent=1 // pred_check_branch
      %69 = sbr.rel (0) target = $region25
    $region24: #{tpu_custom_call.1} parent=1 // pred_region
      _
    $region25: #{tpu_custom_call.1} parent=1 // pred_fallthru
      _
    // Predicated region
    $region26: #{tpu_custom_call.1} parent=1 // pred_check
      _
    $region27: #{tpu_custom_call.1} parent=1 // pred_check_branch
      %71 = sbr.rel (0) target = $region29
    $region28: #{tpu_custom_call.1} parent=1 // pred_region
      _
    $region29: #{tpu_custom_call.1} parent=1 // pred_fallthru
      _
    // Predicated region
    $region30: #{tpu_custom_call.1} parent=1 // pred_check
      _
    $region31: #{tpu_custom_call.1} parent=1 // pred_check_branch
      %73 = sbr.rel (0) target = $region33
    $region32: #{tpu_custom_call.1} parent=1 // pred_region
      %75 = dma.done [#allocation4], 256
    $region33: #{tpu_custom_call.1} parent=1 // pred_fallthru
      _
    // Predicated region
    $region34: #{tpu_custom_call.1} parent=1 // pred_check
      _
    $region35: #{tpu_custom_call.1} parent=1 // pred_check_branch
      %77 = sbr.rel (0) target = $region37
    $region36: #{tpu_custom_call.1} parent=1 // pred_region
      %79 = dma.done [#allocation6], 8192
    $region37: #{tpu_custom_call.1} parent=1 // pred_fallthru
      _
    // Predicated region
    $region38: #{tpu_custom_call.1} parent=1 // pred_check
      _
    $region39: #{tpu_custom_call.1} parent=1 // pred_check_branch
      %81 = sbr.rel (0) target = $region41
    $region40: #{tpu_custom_call.1} parent=1 // pred_region
      %83 = dma.done [#allocation6], 64
    $region41: #{tpu_custom_call.1} parent=1 // pred_fallthru
      _
    // Predicated region
    $region42: #{tpu_custom_call.1} parent=1 // pred_check
      _
    $region43: #{tpu_custom_call.1} parent=1 // pred_check_branch
      %85 = sbr.rel (0) target = $region45
    $region44: #{tpu_custom_call.1} parent=1 // pred_region
      %87 = dma.done [#allocation9], 8192
    $region45: #{tpu_custom_call.1} parent=1 // pred_fallthru
      _
    %v88 = vld [vmem:[#allocation7] sm:$0xf]
    %v90 = vperm.slane %v88, 0
    %v91 = vperm.slane %v88, 1
    %v92 = vperm.slane %v88, 2
    %v93 = vperm.slane %v88, 3
    %v98 = vld [vmem:[%s4] sm:$0xf]
    %v100 = vperm.slane %v98, 0
    %v101 = vperm.slane %v98, 1
    %v102 = vperm.slane %v98, 2
    %v103 = vperm.slane %v98, 3
    %v108 = vld [vmem:[#allocation3] sm:$0x3]
    %v109 = vadd.f32 %v108, 0.0
    %v110 = vld [vmem:[#allocation5] sm:$0xff]
    %v111 = vld [vmem:[#allocation5 + $0x8] sm:$0xff]
    %v112 = vld [vmem:[#allocation5 + $0x10] sm:$0xff]
    %v113 = vld [vmem:[#allocation5 + $0x18] sm:$0xff]
    %v114 = vld [vmem:[#allocation5 + $0x20] sm:$0xff]
    %v115 = vld [vmem:[#allocation5 + $0x28] sm:$0xff]
    %v116 = vld [vmem:[#allocation5 + $0x30] sm:$0xff]
    %v117 = vld [vmem:[#allocation5 + $0x38] sm:$0xff]
    %v118 = vld [vmem:[#allocation5 + $0x40] sm:$0xff]
    %v119 = vld [vmem:[#allocation5 + $0x48] sm:$0xff]
    %v120 = vld [vmem:[#allocation5 + $0x50] sm:$0xff]
    %v121 = vld [vmem:[#allocation5 + $0x58] sm:$0xff]
    %v122 = vld [vmem:[#allocation5 + $0x60] sm:$0xff]
    %v123 = vld [vmem:[#allocation5 + $0x68] sm:$0xff]
    %v124 = vld [vmem:[#allocation5 + $0x70] sm:$0xff]
    %v125 = vld [vmem:[#allocation5 + $0x78] sm:$0xff]
    %v126 = vld [vmem:[#allocation5 + $0x80] sm:$0xff]
    %v127 = vld [vmem:[#allocation5 + $0x88] sm:$0xff]
    %v128 = vld [vmem:[#allocation5 + $0x90] sm:$0xff]
    %v129 = vld [vmem:[#allocation5 + $0x98] sm:$0xff]
    %v130 = vld [vmem:[#allocation5 + $0xa0] sm:$0xff]
    %v131 = vld [vmem:[#allocation5 + $0xa8] sm:$0xff]
    %v132 = vld [vmem:[#allocation5 + $0xb0] sm:$0xff]
    %v133 = vld [vmem:[#allocation5 + $0xb8] sm:$0xff]
    %v134 = vld [vmem:[#allocation5 + $0xc0] sm:$0xff]
    %v135 = vld [vmem:[#allocation5 + $0xc8] sm:$0xff]
    %v136 = vld [vmem:[#allocation5 + $0xd0] sm:$0xff]
    %v137 = vld [vmem:[#allocation5 + $0xd8] sm:$0xff]
    %v138 = vld [vmem:[#allocation5 + $0xe0] sm:$0xff]
    %v139 = vld [vmem:[#allocation5 + $0xe8] sm:$0xff]
    %v140 = vld [vmem:[#allocation5 + $0xf0] sm:$0xff]
    %v141 = vld [vmem:[#allocation5 + $0xf8] sm:$0xff]
    %v142 = vld [vmem:[#allocation5 + $0x100] sm:$0xff]
    %v143 = vld [vmem:[#allocation5 + $0x108] sm:$0xff]
    %v144 = vld [vmem:[#allocation5 + $0x110] sm:$0xff]
    %v145 = vld [vmem:[#allocation5 + $0x118] sm:$0xff]
    %v146 = vld [vmem:[#allocation5 + $0x120] sm:$0xff]
    %v147 = vld [vmem:[#allocation5 + $0x128] sm:$0xff]
    %v148 = vld [vmem:[#allocation5 + $0x130] sm:$0xff]
    %v149 = vld [vmem:[#allocation5 + $0x138] sm:$0xff]
    %v150 = vld [vmem:[#allocation5 + $0x140] sm:$0xff]
    %v151 = vld [vmem:[#allocation5 + $0x148] sm:$0xff]
    %v152 = vld [vmem:[#allocation5 + $0x150] sm:$0xff]
    %v153 = vld [vmem:[#allocation5 + $0x158] sm:$0xff]
    %v154 = vld [vmem:[#allocation5 + $0x160] sm:$0xff]
    %v155 = vld [vmem:[#allocation5 + $0x168] sm:$0xff]
    %v156 = vld [vmem:[#allocation5 + $0x170] sm:$0xff]
    %v157 = vld [vmem:[#allocation5 + $0x178] sm:$0xff]
    %v158 = vld [vmem:[#allocation5 + $0x180] sm:$0xff]
    %v159 = vld [vmem:[#allocation5 + $0x188] sm:$0xff]
    %v160 = vld [vmem:[#allocation5 + $0x190] sm:$0xff]
    %v161 = vld [vmem:[#allocation5 + $0x198] sm:$0xff]
    %v162 = vld [vmem:[#allocation5 + $0x1a0] sm:$0xff]
    %v163 = vld [vmem:[#allocation5 + $0x1a8] sm:$0xff]
    %v164 = vld [vmem:[#allocation5 + $0x1b0] sm:$0xff]
    %v165 = vld [vmem:[#allocation5 + $0x1b8] sm:$0xff]
    %v166 = vld [vmem:[#allocation5 + $0x1c0] sm:$0xff]
    %v167 = vld [vmem:[#allocation5 + $0x1c8] sm:$0xff]
    %v168 = vld [vmem:[#allocation5 + $0x1d0] sm:$0xff]
    %v169 = vld [vmem:[#allocation5 + $0x1d8] sm:$0xff]
    %v170 = vld [vmem:[#allocation5 + $0x1e0] sm:$0xff]
    %v171 = vld [vmem:[#allocation5 + $0x1e8] sm:$0xff]
    %v172 = vld [vmem:[#allocation5 + $0x1f0] sm:$0xff]
    %v173 = vld [vmem:[#allocation5 + $0x1f8] sm:$0xff]
    %174 = vmatpush.msra.mxu0 %v170
    %175 = vmatpush.msra.mxu0 %v166
    %176 = vmatpush.msra.mxu0 %v162
    %177 = vmatpush.msra.mxu0 %v158
    %178 = vmatpush.msra.mxu0 %v154
    %179 = vmatpush.msra.mxu0 %v150
    %180 = vmatpush.msra.mxu0 %v146
    %181 = vmatpush.msra.mxu0 %v142
    %182 = vmatpush.msra.mxu0 %v138
    %183 = vmatpush.msra.mxu0 %v134
    %184 = vmatpush.msra.mxu0 %v130
    %185 = vmatpush.msra.mxu0 %v126
    %186 = vmatpush.msra.mxu0 %v122
    %187 = vmatpush.msra.mxu0 %v118
    %188 = vmatpush.msra.mxu0 %v114
    %189 = vmatpush.msra.mxu0 %v110
    %190 = vmatmul.f32.gmra.mxu0 %v109
    %v191 = vpop.f32.mrf.mxu0
    %v192 = vadd.f32 %v90, %v191
    %193 = vdwg.mxu0
    %194 = vmatpush.msra.mxu0 %v171
    %195 = vmatpush.msra.mxu0 %v167
    %196 = vmatpush.msra.mxu0 %v163
    %197 = vmatpush.msra.mxu0 %v159
    %198 = vmatpush.msra.mxu0 %v155
    %199 = vmatpush.msra.mxu0 %v151
    %200 = vmatpush.msra.mxu0 %v147
    %201 = vmatpush.msra.mxu0 %v143
    %202 = vmatpush.msra.mxu0 %v139
    %203 = vmatpush.msra.mxu0 %v135
    %204 = vmatpush.msra.mxu0 %v131
    %205 = vmatpush.msra.mxu0 %v127
    %206 = vmatpush.msra.mxu0 %v123
    %207 = vmatpush.msra.mxu0 %v119
    %208 = vmatpush.msra.mxu0 %v115
    %209 = vmatpush.msra.mxu0 %v111
    %210 = vmatmul.f32.gmra.mxu0 %v109
    %v211 = vpop.f32.mrf.mxu0
    %v212 = vadd.f32 %v91, %v211
    %213 = vdwg.mxu0
    %214 = vmatpush.msra.mxu0 %v172
    %215 = vmatpush.msra.mxu0 %v168
    %216 = vmatpush.msra.mxu0 %v164
    %217 = vmatpush.msra.mxu0 %v160
    %218 = vmatpush.msra.mxu0 %v156
    %219 = vmatpush.msra.mxu0 %v152
    %220 = vmatpush.msra.mxu0 %v148
    %221 = vmatpush.msra.mxu0 %v144
    %222 = vmatpush.msra.mxu0 %v140
    %223 = vmatpush.msra.mxu0 %v136
    %224 = vmatpush.msra.mxu0 %v132
    %225 = vmatpush.msra.mxu0 %v128
    %226 = vmatpush.msra.mxu0 %v124
    %227 = vmatpush.msra.mxu0 %v120
    %228 = vmatpush.msra.mxu0 %v116
    %229 = vmatpush.msra.mxu0 %v112
    %230 = vmatmul.f32.gmra.mxu0 %v109
    %v231 = vpop.f32.mrf.mxu0
    %v232 = vadd.f32 %v92, %v231
    %233 = vdwg.mxu0
    %234 = vmatpush.msra.mxu0 %v173
    %235 = vmatpush.msra.mxu0 %v169
    %236 = vmatpush.msra.mxu0 %v165
    %237 = vmatpush.msra.mxu0 %v161
    %238 = vmatpush.msra.mxu0 %v157
    %239 = vmatpush.msra.mxu0 %v153
    %240 = vmatpush.msra.mxu0 %v149
    %241 = vmatpush.msra.mxu0 %v145
    %242 = vmatpush.msra.mxu0 %v141
    %243 = vmatpush.msra.mxu0 %v137
    %244 = vmatpush.msra.mxu0 %v133
    %245 = vmatpush.msra.mxu0 %v129
    %246 = vmatpush.msra.mxu0 %v125
    %247 = vmatpush.msra.mxu0 %v121
    %248 = vmatpush.msra.mxu0 %v117
    %249 = vmatpush.msra.mxu0 %v113
    %250 = vmatmul.f32.gmra.mxu0 %v109
    %v251 = vpop.f32.mrf.mxu0
    %v252 = vadd.f32 %v93, %v251
    %253 = vdwg.mxu0
    %v254 = vtanh.pop %v192
    %v255 = vtanh.pop %v212
    %v256 = vtanh.pop %v232
    %v257 = vtanh.pop %v252
    %v258 = vmul.f32 %v254, 0.5
    %v259 = vadd.f32 %v258, 0.5
    %v260 = vmul.f32 %v255, 0.5
    %v261 = vadd.f32 %v260, 0.5
    %v262 = vmul.f32 %v257, 0.5
    %v263 = vadd.f32 %v262, 0.5
    %v264 = vmul.f32 %v261, 0.0
    %v265 = vmul.f32 %v259, %v256
    %v266 = vadd.f32 %v264, %v265
    %v267 = vtanh.pop %v266
    %v268 = vmul.f32 %v263, %v267
    %v269 = vadd.f32 %v268, 0.0
    %v270 = vld [vmem:[#allocation8] sm:$0xff]
    %v271 = vld [vmem:[#allocation8 + $0x8] sm:$0xff]
    %v272 = vld [vmem:[#allocation8 + $0x10] sm:$0xff]
    %v273 = vld [vmem:[#allocation8 + $0x18] sm:$0xff]
    %v274 = vld [vmem:[#allocation8 + $0x20] sm:$0xff]
    %v275 = vld [vmem:[#allocation8 + $0x28] sm:$0xff]
    %v276 = vld [vmem:[#allocation8 + $0x30] sm:$0xff]
    %v277 = vld [vmem:[#allocation8 + $0x38] sm:$0xff]
    %v278 = vld [vmem:[#allocation8 + $0x40] sm:$0xff]
    %v279 = vld [vmem:[#allocation8 + $0x48] sm:$0xff]
    %v280 = vld [vmem:[#allocation8 + $0x50] sm:$0xff]
    %v281 = vld [vmem:[#allocation8 + $0x58] sm:$0xff]
    %v282 = vld [vmem:[#allocation8 + $0x60] sm:$0xff]
    %v283 = vld [vmem:[#allocation8 + $0x68] sm:$0xff]
    %v284 = vld [vmem:[#allocation8 + $0x70] sm:$0xff]
    %v285 = vld [vmem:[#allocation8 + $0x78] sm:$0xff]
    %v286 = vld [vmem:[#allocation8 + $0x80] sm:$0xff]
    %v287 = vld [vmem:[#allocation8 + $0x88] sm:$0xff]
    %v288 = vld [vmem:[#allocation8 + $0x90] sm:$0xff]
    %v289 = vld [vmem:[#allocation8 + $0x98] sm:$0xff]
    %v290 = vld [vmem:[#allocation8 + $0xa0] sm:$0xff]
    %v291 = vld [vmem:[#allocation8 + $0xa8] sm:$0xff]
    %v292 = vld [vmem:[#allocation8 + $0xb0] sm:$0xff]
    %v293 = vld [vmem:[#allocation8 + $0xb8] sm:$0xff]
    %v294 = vld [vmem:[#allocation8 + $0xc0] sm:$0xff]
    %v295 = vld [vmem:[#allocation8 + $0xc8] sm:$0xff]
    %v296 = vld [vmem:[#allocation8 + $0xd0] sm:$0xff]
    %v297 = vld [vmem:[#allocation8 + $0xd8] sm:$0xff]
    %v298 = vld [vmem:[#allocation8 + $0xe0] sm:$0xff]
    %v299 = vld [vmem:[#allocation8 + $0xe8] sm:$0xff]
    %v300 = vld [vmem:[#allocation8 + $0xf0] sm:$0xff]
    %v301 = vld [vmem:[#allocation8 + $0xf8] sm:$0xff]
    %v302 = vld [vmem:[#allocation8 + $0x100] sm:$0xff]
    %v303 = vld [vmem:[#allocation8 + $0x108] sm:$0xff]
    %v304 = vld [vmem:[#allocation8 + $0x110] sm:$0xff]
    %v305 = vld [vmem:[#allocation8 + $0x118] sm:$0xff]
    %v306 = vld [vmem:[#allocation8 + $0x120] sm:$0xff]
    %v307 = vld [vmem:[#allocation8 + $0x128] sm:$0xff]
    %v308 = vld [vmem:[#allocation8 + $0x130] sm:$0xff]
    %v309 = vld [vmem:[#allocation8 + $0x138] sm:$0xff]
    %v310 = vld [vmem:[#allocation8 + $0x140] sm:$0xff]
    %v311 = vld [vmem:[#allocation8 + $0x148] sm:$0xff]
    %v312 = vld [vmem:[#allocation8 + $0x150] sm:$0xff]
    %v313 = vld [vmem:[#allocation8 + $0x158] sm:$0xff]
    %v314 = vld [vmem:[#allocation8 + $0x160] sm:$0xff]
    %v315 = vld [vmem:[#allocation8 + $0x168] sm:$0xff]
    %v316 = vld [vmem:[#allocation8 + $0x170] sm:$0xff]
    %v317 = vld [vmem:[#allocation8 + $0x178] sm:$0xff]
    %v318 = vld [vmem:[#allocation8 + $0x180] sm:$0xff]
    %v319 = vld [vmem:[#allocation8 + $0x188] sm:$0xff]
    %v320 = vld [vmem:[#allocation8 + $0x190] sm:$0xff]
    %v321 = vld [vmem:[#allocation8 + $0x198] sm:$0xff]
    %v322 = vld [vmem:[#allocation8 + $0x1a0] sm:$0xff]
    %v323 = vld [vmem:[#allocation8 + $0x1a8] sm:$0xff]
    %v324 = vld [vmem:[#allocation8 + $0x1b0] sm:$0xff]
    %v325 = vld [vmem:[#allocation8 + $0x1b8] sm:$0xff]
    %v326 = vld [vmem:[#allocation8 + $0x1c0] sm:$0xff]
    %v327 = vld [vmem:[#allocation8 + $0x1c8] sm:$0xff]
    %v328 = vld [vmem:[#allocation8 + $0x1d0] sm:$0xff]
    %v329 = vld [vmem:[#allocation8 + $0x1d8] sm:$0xff]
    %v330 = vld [vmem:[#allocation8 + $0x1e0] sm:$0xff]
    %v331 = vld [vmem:[#allocation8 + $0x1e8] sm:$0xff]
    %v332 = vld [vmem:[#allocation8 + $0x1f0] sm:$0xff]
    %v333 = vld [vmem:[#allocation8 + $0x1f8] sm:$0xff]
    %334 = vmatpush.msra.mxu0 %v330
    %335 = vmatpush.msra.mxu0 %v326
    %336 = vmatpush.msra.mxu0 %v322
    %337 = vmatpush.msra.mxu0 %v318
    %338 = vmatpush.msra.mxu0 %v314
    %339 = vmatpush.msra.mxu0 %v310
    %340 = vmatpush.msra.mxu0 %v306
    %341 = vmatpush.msra.mxu0 %v302
    %342 = vmatpush.msra.mxu0 %v298
    %343 = vmatpush.msra.mxu0 %v294
    %344 = vmatpush.msra.mxu0 %v290
    %345 = vmatpush.msra.mxu0 %v286
    %346 = vmatpush.msra.mxu0 %v282
    %347 = vmatpush.msra.mxu0 %v278
    %348 = vmatpush.msra.mxu0 %v274
    %349 = vmatpush.msra.mxu0 %v270
    %350 = vmatmul.f32.gmra.mxu0 %v269
    %v351 = vpop.f32.mrf.mxu0
    %v352 = vadd.f32 %v100, %v351
    %353 = vdwg.mxu0
    %354 = vmatpush.msra.mxu0 %v331
    %355 = vmatpush.msra.mxu0 %v327
    %356 = vmatpush.msra.mxu0 %v323
    %357 = vmatpush.msra.mxu0 %v319
    %358 = vmatpush.msra.mxu0 %v315
    %359 = vmatpush.msra.mxu0 %v311
    %360 = vmatpush.msra.mxu0 %v307
    %361 = vmatpush.msra.mxu0 %v303
    %362 = vmatpush.msra.mxu0 %v299
    %363 = vmatpush.msra.mxu0 %v295
    %364 = vmatpush.msra.mxu0 %v291
    %365 = vmatpush.msra.mxu0 %v287
    %366 = vmatpush.msra.mxu0 %v283
    %367 = vmatpush.msra.mxu0 %v279
    %368 = vmatpush.msra.mxu0 %v275
    %369 = vmatpush.msra.mxu0 %v271
    %370 = vmatmul.f32.gmra.mxu0 %v269
    %v371 = vpop.f32.mrf.mxu0
    %v372 = vadd.f32 %v101, %v371
    %373 = vdwg.mxu0
    %374 = vmatpush.msra.mxu0 %v332
    %375 = vmatpush.msra.mxu0 %v328
    %376 = vmatpush.msra.mxu0 %v324
    %377 = vmatpush.msra.mxu0 %v320
    %378 = vmatpush.msra.mxu0 %v316
    %379 = vmatpush.msra.mxu0 %v312
    %380 = vmatpush.msra.mxu0 %v308
    %381 = vmatpush.msra.mxu0 %v304
    %382 = vmatpush.msra.mxu0 %v300
    %383 = vmatpush.msra.mxu0 %v296
    %384 = vmatpush.msra.mxu0 %v292
    %385 = vmatpush.msra.mxu0 %v288
    %386 = vmatpush.msra.mxu0 %v284
    %387 = vmatpush.msra.mxu0 %v280
    %388 = vmatpush.msra.mxu0 %v276
    %389 = vmatpush.msra.mxu0 %v272
    %390 = vmatmul.f32.gmra.mxu0 %v269
    %v391 = vpop.f32.mrf.mxu0
    %v392 = vadd.f32 %v102, %v391
    %393 = vdwg.mxu0
    %394 = vmatpush.msra.mxu0 %v333
    %395 = vmatpush.msra.mxu0 %v329
    %396 = vmatpush.msra.mxu0 %v325
    %397 = vmatpush.msra.mxu0 %v321
    %398 = vmatpush.msra.mxu0 %v317
    %399 = vmatpush.msra.mxu0 %v313
    %400 = vmatpush.msra.mxu0 %v309
    %401 = vmatpush.msra.mxu0 %v305
    %402 = vmatpush.msra.mxu0 %v301
    %403 = vmatpush.msra.mxu0 %v297
    %404 = vmatpush.msra.mxu0 %v293
    %405 = vmatpush.msra.mxu0 %v289
    %406 = vmatpush.msra.mxu0 %v285
    %407 = vmatpush.msra.mxu0 %v281
    %408 = vmatpush.msra.mxu0 %v277
    %409 = vmatpush.msra.mxu0 %v273
    %410 = vmatmul.f32.gmra.mxu0 %v269
    %v411 = vpop.f32.mrf.mxu0
    %v412 = vadd.f32 %v103, %v411
    %413 = vdwg.mxu0
    %v414 = vtanh.pop %v352
    %v415 = vtanh.pop %v372
    %v416 = vtanh.pop %v392
    %v417 = vtanh.pop %v412
    %v418 = vmul.f32 %v414, 0.5
    %v419 = vadd.f32 %v418, 0.5
    %v420 = vmul.f32 %v415, 0.5
    %v421 = vadd.f32 %v420, 0.5
    %v422 = vmul.f32 %v417, 0.5
    %v423 = vadd.f32 %v422, 0.5
    %v424 = vmul.f32 %v421, 0.0
    %v425 = vmul.f32 %v419, %v416
    %v426 = vadd.f32 %v424, %v425
    %v427 = vtanh.pop %v426
    %v428 = vmul.f32 %v423, %v427
    %s429 = scalar_lea.vmem [#allocation3], 2
    %v430 = vld [vmem:[%s429] sm:$0x3]
    %v431 = vadd.f32 %v430, %v268
    %432 = vmatpush.msra.mxu0 %v170
    %433 = vmatpush.msra.mxu0 %v166
    %434 = vmatpush.msra.mxu0 %v162
    %435 = vmatpush.msra.mxu0 %v158
    %436 = vmatpush.msra.mxu0 %v154
    %437 = vmatpush.msra.mxu0 %v150
    %438 = vmatpush.msra.mxu0 %v146
    %439 = vmatpush.msra.mxu0 %v142
    %440 = vmatpush.msra.mxu0 %v138
    %441 = vmatpush.msra.mxu0 %v134
    %442 = vmatpush.msra.mxu0 %v130
    %443 = vmatpush.msra.mxu0 %v126
    %444 = vmatpush.msra.mxu0 %v122
    %445 = vmatpush.msra.mxu0 %v118
    %446 = vmatpush.msra.mxu0 %v114
    %447 = vmatpush.msra.mxu0 %v110
    %448 = vmatmul.f32.gmra.mxu0 %v431
    %v449 = vpop.f32.mrf.mxu0
    %v450 = vadd.f32 %v90, %v449
    %451 = vdwg.mxu0
    %452 = vmatpush.msra.mxu0 %v171
    %453 = vmatpush.msra.mxu0 %v167
    %454 = vmatpush.msra.mxu0 %v163
    %455 = vmatpush.msra.mxu0 %v159
    %456 = vmatpush.msra.mxu0 %v155
    %457 = vmatpush.msra.mxu0 %v151
    %458 = vmatpush.msra.mxu0 %v147
    %459 = vmatpush.msra.mxu0 %v143
    %460 = vmatpush.msra.mxu0 %v139
    %461 = vmatpush.msra.mxu0 %v135
    %462 = vmatpush.msra.mxu0 %v131
    %463 = vmatpush.msra.mxu0 %v127
    %464 = vmatpush.msra.mxu0 %v123
    %465 = vmatpush.msra.mxu0 %v119
    %466 = vmatpush.msra.mxu0 %v115
    %467 = vmatpush.msra.mxu0 %v111
    %468 = vmatmul.f32.gmra.mxu0 %v431
    %v469 = vpop.f32.mrf.mxu0
    %v470 = vadd.f32 %v91, %v469
    %471 = vdwg.mxu0
    %472 = vmatpush.msra.mxu0 %v172
    %473 = vmatpush.msra.mxu0 %v168
    %474 = vmatpush.msra.mxu0 %v164
    %475 = vmatpush.msra.mxu0 %v160
    %476 = vmatpush.msra.mxu0 %v156
    %477 = vmatpush.msra.mxu0 %v152
    %478 = vmatpush.msra.mxu0 %v148
    %479 = vmatpush.msra.mxu0 %v144
    %480 = vmatpush.msra.mxu0 %v140
    %481 = vmatpush.msra.mxu0 %v136
    %482 = vmatpush.msra.mxu0 %v132
    %483 = vmatpush.msra.mxu0 %v128
    %484 = vmatpush.msra.mxu0 %v124
    %485 = vmatpush.msra.mxu0 %v120
    %486 = vmatpush.msra.mxu0 %v116
    %487 = vmatpush.msra.mxu0 %v112
    %488 = vmatmul.f32.gmra.mxu0 %v431
    %v489 = vpop.f32.mrf.mxu0
    %v490 = vadd.f32 %v92, %v489
    %491 = vdwg.mxu0
    %492 = vmatpush.msra.mxu0 %v173
    %493 = vmatpush.msra.mxu0 %v169
    %494 = vmatpush.msra.mxu0 %v165
    %495 = vmatpush.msra.mxu0 %v161
    %496 = vmatpush.msra.mxu0 %v157
    %497 = vmatpush.msra.mxu0 %v153
    %498 = vmatpush.msra.mxu0 %v149
    %499 = vmatpush.msra.mxu0 %v145
    %500 = vmatpush.msra.mxu0 %v141
    %501 = vmatpush.msra.mxu0 %v137
    %502 = vmatpush.msra.mxu0 %v133
    %503 = vmatpush.msra.mxu0 %v129
    %504 = vmatpush.msra.mxu0 %v125
    %505 = vmatpush.msra.mxu0 %v121
    %506 = vmatpush.msra.mxu0 %v117
    %507 = vmatpush.msra.mxu0 %v113
    %508 = vmatmul.f32.gmra.mxu0 %v431
    %v509 = vpop.f32.mrf.mxu0
    %v510 = vadd.f32 %v93, %v509
    %511 = vdwg.mxu0
    %v512 = vtanh.pop %v450
    %v513 = vtanh.pop %v470
    %v514 = vtanh.pop %v490
    %v515 = vtanh.pop %v510
    %v516 = vmul.f32 %v512, 0.5
    %v517 = vadd.f32 %v516, 0.5
    %v518 = vmul.f32 %v513, 0.5
    %v519 = vadd.f32 %v518, 0.5
    %v520 = vmul.f32 %v515, 0.5
    %v521 = vadd.f32 %v520, 0.5
    %v522 = vmul.f32 %v519, %v266
    %v523 = vmul.f32 %v517, %v514
    %v524 = vadd.f32 %v522, %v523
    %v525 = vtanh.pop %v524
    %v526 = vmul.f32 %v521, %v525
    %v527 = vadd.f32 %v526, %v428
    %528 = vmatpush.msra.mxu0 %v330
    %529 = vmatpush.msra.mxu0 %v326
    %530 = vmatpush.msra.mxu0 %v322
    %531 = vmatpush.msra.mxu0 %v318
    %532 = vmatpush.msra.mxu0 %v314
    %533 = vmatpush.msra.mxu0 %v310
    %534 = vmatpush.msra.mxu0 %v306
    %535 = vmatpush.msra.mxu0 %v302
    %536 = vmatpush.msra.mxu0 %v298
    %537 = vmatpush.msra.mxu0 %v294
    %538 = vmatpush.msra.mxu0 %v290
    %539 = vmatpush.msra.mxu0 %v286
    %540 = vmatpush.msra.mxu0 %v282
    %541 = vmatpush.msra.mxu0 %v278
    %542 = vmatpush.msra.mxu0 %v274
    %543 = vmatpush.msra.mxu0 %v270
    %544 = vmatmul.f32.gmra.mxu0 %v527
    %v545 = vpop.f32.mrf.mxu0
    %v546 = vadd.f32 %v100, %v545
    %547 = vdwg.mxu0
    %548 = vmatpush.msra.mxu0 %v331
    %549 = vmatpush.msra.mxu0 %v327
    %550 = vmatpush.msra.mxu0 %v323
    %551 = vmatpush.msra.mxu0 %v319
    %552 = vmatpush.msra.mxu0 %v315
    %553 = vmatpush.msra.mxu0 %v311
    %554 = vmatpush.msra.mxu0 %v307
    %555 = vmatpush.msra.mxu0 %v303
    %556 = vmatpush.msra.mxu0 %v299
    %557 = vmatpush.msra.mxu0 %v295
    %558 = vmatpush.msra.mxu0 %v291
    %559 = vmatpush.msra.mxu0 %v287
    %560 = vmatpush.msra.mxu0 %v283
    %561 = vmatpush.msra.mxu0 %v279
    %562 = vmatpush.msra.mxu0 %v275
    %563 = vmatpush.msra.mxu0 %v271
    %564 = vmatmul.f32.gmra.mxu0 %v527
    %v565 = vpop.f32.mrf.mxu0
    %v566 = vadd.f32 %v101, %v565
    %567 = vdwg.mxu0
    %568 = vmatpush.msra.mxu0 %v332
    %569 = vmatpush.msra.mxu0 %v328
    %570 = vmatpush.msra.mxu0 %v324
    %571 = vmatpush.msra.mxu0 %v320
    %572 = vmatpush.msra.mxu0 %v316
    %573 = vmatpush.msra.mxu0 %v312
    %574 = vmatpush.msra.mxu0 %v308
    %575 = vmatpush.msra.mxu0 %v304
    %576 = vmatpush.msra.mxu0 %v300
    %577 = vmatpush.msra.mxu0 %v296
    %578 = vmatpush.msra.mxu0 %v292
    %579 = vmatpush.msra.mxu0 %v288
    %580 = vmatpush.msra.mxu0 %v284
    %581 = vmatpush.msra.mxu0 %v280
    %582 = vmatpush.msra.mxu0 %v276
    %583 = vmatpush.msra.mxu0 %v272
    %584 = vmatmul.f32.gmra.mxu0 %v527
    %v585 = vpop.f32.mrf.mxu0
    %v586 = vadd.f32 %v102, %v585
    %587 = vdwg.mxu0
    %588 = vmatpush.msra.mxu0 %v333
    %589 = vmatpush.msra.mxu0 %v329
    %590 = vmatpush.msra.mxu0 %v325
    %591 = vmatpush.msra.mxu0 %v321
    %592 = vmatpush.msra.mxu0 %v317
    %593 = vmatpush.msra.mxu0 %v313
    %594 = vmatpush.msra.mxu0 %v309
    %595 = vmatpush.msra.mxu0 %v305
    %596 = vmatpush.msra.mxu0 %v301
    %597 = vmatpush.msra.mxu0 %v297
    %598 = vmatpush.msra.mxu0 %v293
    %599 = vmatpush.msra.mxu0 %v289
    %600 = vmatpush.msra.mxu0 %v285
    %601 = vmatpush.msra.mxu0 %v281
    %602 = vmatpush.msra.mxu0 %v277
    %603 = vmatpush.msra.mxu0 %v273
    %604 = vmatmul.f32.gmra.mxu0 %v527
    %v605 = vpop.f32.mrf.mxu0
    %v606 = vadd.f32 %v103, %v605
    %607 = vdwg.mxu0
    %v608 = vtanh.pop %v546
    %v609 = vtanh.pop %v566
    %v610 = vtanh.pop %v586
    %v611 = vtanh.pop %v606
    %v612 = vmul.f32 %v608, 0.5
    %v613 = vadd.f32 %v612, 0.5
    %v614 = vmul.f32 %v609, 0.5
    %v615 = vadd.f32 %v614, 0.5
    %v616 = vmul.f32 %v611, 0.5
    %v617 = vadd.f32 %v616, 0.5
    %v618 = vmul.f32 %v615, %v426
    %v619 = vmul.f32 %v613, %v610
    %v620 = vadd.f32 %v618, %v619
    %v621 = vtanh.pop %v620
    %v622 = vmul.f32 %v617, %v621
    %s623 = scalar_lea.vmem [#allocation3], 4
    %v624 = vld [vmem:[%s623] sm:$0x3]
    %v625 = vadd.f32 %v624, %v526
    %626 = vmatpush.msra.mxu0 %v170
    %627 = vmatpush.msra.mxu0 %v166
    %628 = vmatpush.msra.mxu0 %v162
    %629 = vmatpush.msra.mxu0 %v158
    %630 = vmatpush.msra.mxu0 %v154
    %631 = vmatpush.msra.mxu0 %v150
    %632 = vmatpush.msra.mxu0 %v146
    %633 = vmatpush.msra.mxu0 %v142
    %634 = vmatpush.msra.mxu0 %v138
    %635 = vmatpush.msra.mxu0 %v134
    %636 = vmatpush.msra.mxu0 %v130
    %637 = vmatpush.msra.mxu0 %v126
    %638 = vmatpush.msra.mxu0 %v122
    %639 = vmatpush.msra.mxu0 %v118
    %640 = vmatpush.msra.mxu0 %v114
    %641 = vmatpush.msra.mxu0 %v110
    %642 = vmatmul.f32.gmra.mxu0 %v625
    %v643 = vpop.f32.mrf.mxu0
    %v644 = vadd.f32 %v90, %v643
    %645 = vdwg.mxu0
    %646 = vmatpush.msra.mxu0 %v171
    %647 = vmatpush.msra.mxu0 %v167
    %648 = vmatpush.msra.mxu0 %v163
    %649 = vmatpush.msra.mxu0 %v159
    %650 = vmatpush.msra.mxu0 %v155
    %651 = vmatpush.msra.mxu0 %v151
    %652 = vmatpush.msra.mxu0 %v147
    %653 = vmatpush.msra.mxu0 %v143
    %654 = vmatpush.msra.mxu0 %v139
    %655 = vmatpush.msra.mxu0 %v135
    %656 = vmatpush.msra.mxu0 %v131
    %657 = vmatpush.msra.mxu0 %v127
    %658 = vmatpush.msra.mxu0 %v123
    %659 = vmatpush.msra.mxu0 %v119
    %660 = vmatpush.msra.mxu0 %v115
    %661 = vmatpush.msra.mxu0 %v111
    %662 = vmatmul.f32.gmra.mxu0 %v625
    %v663 = vpop.f32.mrf.mxu0
    %v664 = vadd.f32 %v91, %v663
    %665 = vdwg.mxu0
    %666 = vmatpush.msra.mxu0 %v172
    %667 = vmatpush.msra.mxu0 %v168
    %668 = vmatpush.msra.mxu0 %v164
    %669 = vmatpush.msra.mxu0 %v160
    %670 = vmatpush.msra.mxu0 %v156
    %671 = vmatpush.msra.mxu0 %v152
    %672 = vmatpush.msra.mxu0 %v148
    %673 = vmatpush.msra.mxu0 %v144
    %674 = vmatpush.msra.mxu0 %v140
    %675 = vmatpush.msra.mxu0 %v136
    %676 = vmatpush.msra.mxu0 %v132
    %677 = vmatpush.msra.mxu0 %v128
    %678 = vmatpush.msra.mxu0 %v124
    %679 = vmatpush.msra.mxu0 %v120
    %680 = vmatpush.msra.mxu0 %v116
    %681 = vmatpush.msra.mxu0 %v112
    %682 = vmatmul.f32.gmra.mxu0 %v625
    %v683 = vpop.f32.mrf.mxu0
    %v684 = vadd.f32 %v92, %v683
    %685 = vdwg.mxu0
    %686 = vmatpush.msra.mxu0 %v173
    %687 = vmatpush.msra.mxu0 %v169
    %688 = vmatpush.msra.mxu0 %v165
    %689 = vmatpush.msra.mxu0 %v161
    %690 = vmatpush.msra.mxu0 %v157
    %691 = vmatpush.msra.mxu0 %v153
    %692 = vmatpush.msra.mxu0 %v149
    %693 = vmatpush.msra.mxu0 %v145
    %694 = vmatpush.msra.mxu0 %v141
    %695 = vmatpush.msra.mxu0 %v137
    %696 = vmatpush.msra.mxu0 %v133
    %697 = vmatpush.msra.mxu0 %v129
    %698 = vmatpush.msra.mxu0 %v125
    %699 = vmatpush.msra.mxu0 %v121
    %700 = vmatpush.msra.mxu0 %v117
    %701 = vmatpush.msra.mxu0 %v113
    %702 = vmatmul.f32.gmra.mxu0 %v625
    %v703 = vpop.f32.mrf.mxu0
    %v704 = vadd.f32 %v93, %v703
    %705 = vdwg.mxu0
    %v706 = vtanh.pop %v644
    %v707 = vtanh.pop %v664
    %v708 = vtanh.pop %v684
    %v709 = vtanh.pop %v704
    %v710 = vmul.f32 %v706, 0.5
    %v711 = vadd.f32 %v710, 0.5
    %v712 = vmul.f32 %v707, 0.5
    %v713 = vadd.f32 %v712, 0.5
    %v714 = vmul.f32 %v709, 0.5
    %v715 = vadd.f32 %v714, 0.5
    %v716 = vmul.f32 %v713, %v524
    %v717 = vmul.f32 %v711, %v708
    %v718 = vadd.f32 %v716, %v717
    %v719 = vtanh.pop %v718
    %v720 = vmul.f32 %v715, %v719
    %v721 = vadd.f32 %v720, %v622
    %722 = vmatpush.msra.mxu0 %v330
    %723 = vmatpush.msra.mxu0 %v326
    %724 = vmatpush.msra.mxu0 %v322
    %725 = vmatpush.msra.mxu0 %v318
    %726 = vmatpush.msra.mxu0 %v314
    %727 = vmatpush.msra.mxu0 %v310
    %728 = vmatpush.msra.mxu0 %v306
    %729 = vmatpush.msra.mxu0 %v302
    %730 = vmatpush.msra.mxu0 %v298
    %731 = vmatpush.msra.mxu0 %v294
    %732 = vmatpush.msra.mxu0 %v290
    %733 = vmatpush.msra.mxu0 %v286
    %734 = vmatpush.msra.mxu0 %v282
    %735 = vmatpush.msra.mxu0 %v278
    %736 = vmatpush.msra.mxu0 %v274
    %737 = vmatpush.msra.mxu0 %v270
    %738 = vmatmul.f32.gmra.mxu0 %v721
    %v739 = vpop.f32.mrf.mxu0
    %v740 = vadd.f32 %v100, %v739
    %741 = vdwg.mxu0
    %742 = vmatpush.msra.mxu0 %v331
    %743 = vmatpush.msra.mxu0 %v327
    %744 = vmatpush.msra.mxu0 %v323
    %745 = vmatpush.msra.mxu0 %v319
    %746 = vmatpush.msra.mxu0 %v315
    %747 = vmatpush.msra.mxu0 %v311
    %748 = vmatpush.msra.mxu0 %v307
    %749 = vmatpush.msra.mxu0 %v303
    %750 = vmatpush.msra.mxu0 %v299
    %751 = vmatpush.msra.mxu0 %v295
    %752 = vmatpush.msra.mxu0 %v291
    %753 = vmatpush.msra.mxu0 %v287
    %754 = vmatpush.msra.mxu0 %v283
    %755 = vmatpush.msra.mxu0 %v279
    %756 = vmatpush.msra.mxu0 %v275
    %757 = vmatpush.msra.mxu0 %v271
    %758 = vmatmul.f32.gmra.mxu0 %v721
    %v759 = vpop.f32.mrf.mxu0
    %v760 = vadd.f32 %v101, %v759
    %761 = vdwg.mxu0
    %762 = vmatpush.msra.mxu0 %v332
    %763 = vmatpush.msra.mxu0 %v328
    %764 = vmatpush.msra.mxu0 %v324
    %765 = vmatpush.msra.mxu0 %v320
    %766 = vmatpush.msra.mxu0 %v316
    %767 = vmatpush.msra.mxu0 %v312
    %768 = vmatpush.msra.mxu0 %v308
    %769 = vmatpush.msra.mxu0 %v304
    %770 = vmatpush.msra.mxu0 %v300
    %771 = vmatpush.msra.mxu0 %v296
    %772 = vmatpush.msra.mxu0 %v292
    %773 = vmatpush.msra.mxu0 %v288
    %774 = vmatpush.msra.mxu0 %v284
    %775 = vmatpush.msra.mxu0 %v280
    %776 = vmatpush.msra.mxu0 %v276
    %777 = vmatpush.msra.mxu0 %v272
    %778 = vmatmul.f32.gmra.mxu0 %v721
    %v779 = vpop.f32.mrf.mxu0
    %v780 = vadd.f32 %v102, %v779
    %781 = vdwg.mxu0
    %782 = vmatpush.msra.mxu0 %v333
    %783 = vmatpush.msra.mxu0 %v329
    %784 = vmatpush.msra.mxu0 %v325
    %785 = vmatpush.msra.mxu0 %v321
    %786 = vmatpush.msra.mxu0 %v317
    %787 = vmatpush.msra.mxu0 %v313
    %788 = vmatpush.msra.mxu0 %v309
    %789 = vmatpush.msra.mxu0 %v305
    %790 = vmatpush.msra.mxu0 %v301
    %791 = vmatpush.msra.mxu0 %v297
    %792 = vmatpush.msra.mxu0 %v293
    %793 = vmatpush.msra.mxu0 %v289
    %794 = vmatpush.msra.mxu0 %v285
    %795 = vmatpush.msra.mxu0 %v281
    %796 = vmatpush.msra.mxu0 %v277
    %797 = vmatpush.msra.mxu0 %v273
    %798 = vmatmul.f32.gmra.mxu0 %v721
    %v799 = vpop.f32.mrf.mxu0
    %v800 = vadd.f32 %v103, %v799
    %801 = vdwg.mxu0
    %v802 = vtanh.pop %v740
    %v803 = vtanh.pop %v760
    %v804 = vtanh.pop %v780
    %v805 = vtanh.pop %v800
    %v806 = vmul.f32 %v802, 0.5
    %v807 = vadd.f32 %v806, 0.5
    %v808 = vmul.f32 %v803, 0.5
    %v809 = vadd.f32 %v808, 0.5
    %v810 = vmul.f32 %v805, 0.5
    %v811 = vadd.f32 %v810, 0.5
    %v812 = vmul.f32 %v809, %v620
    %v813 = vmul.f32 %v807, %v804
    %v814 = vadd.f32 %v812, %v813
    %v815 = vtanh.pop %v814
    %v816 = vmul.f32 %v811, %v815
    %s817 = scalar_lea.vmem [#allocation3], 6
    %v818 = vld [vmem:[%s817] sm:$0x3]
    %v819 = vadd.f32 %v818, %v720
    %820 = vmatpush.msra.mxu0 %v170
    %821 = vmatpush.msra.mxu0 %v166
    %822 = vmatpush.msra.mxu0 %v162
    %823 = vmatpush.msra.mxu0 %v158
    %824 = vmatpush.msra.mxu0 %v154
    %825 = vmatpush.msra.mxu0 %v150
    %826 = vmatpush.msra.mxu0 %v146
    %827 = vmatpush.msra.mxu0 %v142
    %828 = vmatpush.msra.mxu0 %v138
    %829 = vmatpush.msra.mxu0 %v134
    %830 = vmatpush.msra.mxu0 %v130
    %831 = vmatpush.msra.mxu0 %v126
    %832 = vmatpush.msra.mxu0 %v122
    %833 = vmatpush.msra.mxu0 %v118
    %834 = vmatpush.msra.mxu0 %v114
    %835 = vmatpush.msra.mxu0 %v110
    %836 = vmatmul.f32.gmra.mxu0 %v819
    %v837 = vpop.f32.mrf.mxu0
    %v838 = vadd.f32 %v90, %v837
    %839 = vdwg.mxu0
    %840 = vmatpush.msra.mxu0 %v171
    %841 = vmatpush.msra.mxu0 %v167
    %842 = vmatpush.msra.mxu0 %v163
    %843 = vmatpush.msra.mxu0 %v159
    %844 = vmatpush.msra.mxu0 %v155
    %845 = vmatpush.msra.mxu0 %v151
    %846 = vmatpush.msra.mxu0 %v147
    %847 = vmatpush.msra.mxu0 %v143
    %848 = vmatpush.msra.mxu0 %v139
    %849 = vmatpush.msra.mxu0 %v135
    %850 = vmatpush.msra.mxu0 %v131
    %851 = vmatpush.msra.mxu0 %v127
    %852 = vmatpush.msra.mxu0 %v123
    %853 = vmatpush.msra.mxu0 %v119
    %854 = vmatpush.msra.mxu0 %v115
    %855 = vmatpush.msra.mxu0 %v111
    %856 = vmatmul.f32.gmra.mxu0 %v819
    %v857 = vpop.f32.mrf.mxu0
    %v858 = vadd.f32 %v91, %v857
    %859 = vdwg.mxu0
    %860 = vmatpush.msra.mxu0 %v172
    %861 = vmatpush.msra.mxu0 %v168
    %862 = vmatpush.msra.mxu0 %v164
    %863 = vmatpush.msra.mxu0 %v160
    %864 = vmatpush.msra.mxu0 %v156
    %865 = vmatpush.msra.mxu0 %v152
    %866 = vmatpush.msra.mxu0 %v148
    %867 = vmatpush.msra.mxu0 %v144
    %868 = vmatpush.msra.mxu0 %v140
    %869 = vmatpush.msra.mxu0 %v136
    %870 = vmatpush.msra.mxu0 %v132
    %871 = vmatpush.msra.mxu0 %v128
    %872 = vmatpush.msra.mxu0 %v124
    %873 = vmatpush.msra.mxu0 %v120
    %874 = vmatpush.msra.mxu0 %v116
    %875 = vmatpush.msra.mxu0 %v112
    %876 = vmatmul.f32.gmra.mxu0 %v819
    %v877 = vpop.f32.mrf.mxu0
    %v878 = vadd.f32 %v92, %v877
    %879 = vdwg.mxu0
    %880 = vmatpush.msra.mxu0 %v173
    %881 = vmatpush.msra.mxu0 %v169
    %882 = vmatpush.msra.mxu0 %v165
    %883 = vmatpush.msra.mxu0 %v161
    %884 = vmatpush.msra.mxu0 %v157
    %885 = vmatpush.msra.mxu0 %v153
    %886 = vmatpush.msra.mxu0 %v149
    %887 = vmatpush.msra.mxu0 %v145
    %888 = vmatpush.msra.mxu0 %v141
    %889 = vmatpush.msra.mxu0 %v137
    %890 = vmatpush.msra.mxu0 %v133
    %891 = vmatpush.msra.mxu0 %v129
    %892 = vmatpush.msra.mxu0 %v125
    %893 = vmatpush.msra.mxu0 %v121
    %894 = vmatpush.msra.mxu0 %v117
    %895 = vmatpush.msra.mxu0 %v113
    %896 = vmatmul.f32.gmra.mxu0 %v819
    %v897 = vpop.f32.mrf.mxu0
    %v898 = vadd.f32 %v93, %v897
    %899 = vdwg.mxu0
    %v900 = vtanh.pop %v838
    %v901 = vtanh.pop %v858
    %v902 = vtanh.pop %v878
    %v903 = vtanh.pop %v898
    %v904 = vmul.f32 %v900, 0.5
    %v905 = vadd.f32 %v904, 0.5
    %v906 = vmul.f32 %v901, 0.5
    %v907 = vadd.f32 %v906, 0.5
    %v908 = vmul.f32 %v903, 0.5
    %v909 = vadd.f32 %v908, 0.5
    %v910 = vmul.f32 %v907, %v718
    %v911 = vmul.f32 %v905, %v902
    %v912 = vadd.f32 %v910, %v911
    %v913 = vtanh.pop %v912
    %v914 = vmul.f32 %v909, %v913
    %v915 = vadd.f32 %v914, %v816
    %916 = vmatpush.msra.mxu0 %v330
    %917 = vmatpush.msra.mxu0 %v326
    %918 = vmatpush.msra.mxu0 %v322
    %919 = vmatpush.msra.mxu0 %v318
    %920 = vmatpush.msra.mxu0 %v314
    %921 = vmatpush.msra.mxu0 %v310
    %922 = vmatpush.msra.mxu0 %v306
    %923 = vmatpush.msra.mxu0 %v302
    %924 = vmatpush.msra.mxu0 %v298
    %925 = vmatpush.msra.mxu0 %v294
    %926 = vmatpush.msra.mxu0 %v290
    %927 = vmatpush.msra.mxu0 %v286
    %928 = vmatpush.msra.mxu0 %v282
    %929 = vmatpush.msra.mxu0 %v278
    %930 = vmatpush.msra.mxu0 %v274
    %931 = vmatpush.msra.mxu0 %v270
    %932 = vmatmul.f32.gmra.mxu0 %v915
    %v933 = vpop.f32.mrf.mxu0
    %v934 = vadd.f32 %v100, %v933
    %935 = vdwg.mxu0
    %936 = vmatpush.msra.mxu0 %v331
    %937 = vmatpush.msra.mxu0 %v327
    %938 = vmatpush.msra.mxu0 %v323
    %939 = vmatpush.msra.mxu0 %v319
    %940 = vmatpush.msra.mxu0 %v315
    %941 = vmatpush.msra.mxu0 %v311
    %942 = vmatpush.msra.mxu0 %v307
    %943 = vmatpush.msra.mxu0 %v303
    %944 = vmatpush.msra.mxu0 %v299
    %945 = vmatpush.msra.mxu0 %v295
    %946 = vmatpush.msra.mxu0 %v291
    %947 = vmatpush.msra.mxu0 %v287
    %948 = vmatpush.msra.mxu0 %v283
    %949 = vmatpush.msra.mxu0 %v279
    %950 = vmatpush.msra.mxu0 %v275
    %951 = vmatpush.msra.mxu0 %v271
    %952 = vmatmul.f32.gmra.mxu0 %v915
    %v953 = vpop.f32.mrf.mxu0
    %v954 = vadd.f32 %v101, %v953
    %955 = vdwg.mxu0
    %956 = vmatpush.msra.mxu0 %v332
    %957 = vmatpush.msra.mxu0 %v328
    %958 = vmatpush.msra.mxu0 %v324
    %959 = vmatpush.msra.mxu0 %v320
    %960 = vmatpush.msra.mxu0 %v316
    %961 = vmatpush.msra.mxu0 %v312
    %962 = vmatpush.msra.mxu0 %v308
    %963 = vmatpush.msra.mxu0 %v304
    %964 = vmatpush.msra.mxu0 %v300
    %965 = vmatpush.msra.mxu0 %v296
    %966 = vmatpush.msra.mxu0 %v292
    %967 = vmatpush.msra.mxu0 %v288
    %968 = vmatpush.msra.mxu0 %v284
    %969 = vmatpush.msra.mxu0 %v280
    %970 = vmatpush.msra.mxu0 %v276
    %971 = vmatpush.msra.mxu0 %v272
    %972 = vmatmul.f32.gmra.mxu0 %v915
    %v973 = vpop.f32.mrf.mxu0
    %v974 = vadd.f32 %v102, %v973
    %975 = vdwg.mxu0
    %976 = vmatpush.msra.mxu0 %v333
    %977 = vmatpush.msra.mxu0 %v329
    %978 = vmatpush.msra.mxu0 %v325
    %979 = vmatpush.msra.mxu0 %v321
    %980 = vmatpush.msra.mxu0 %v317
    %981 = vmatpush.msra.mxu0 %v313
    %982 = vmatpush.msra.mxu0 %v309
    %983 = vmatpush.msra.mxu0 %v305
    %984 = vmatpush.msra.mxu0 %v301
    %985 = vmatpush.msra.mxu0 %v297
    %986 = vmatpush.msra.mxu0 %v293
    %987 = vmatpush.msra.mxu0 %v289
    %988 = vmatpush.msra.mxu0 %v285
    %989 = vmatpush.msra.mxu0 %v281
    %990 = vmatpush.msra.mxu0 %v277
    %991 = vmatpush.msra.mxu0 %v273
    %992 = vmatmul.f32.gmra.mxu0 %v915
    %v993 = vpop.f32.mrf.mxu0
    %v994 = vadd.f32 %v103, %v993
    %995 = vdwg.mxu0
    %v996 = vtanh.pop %v934
    %v997 = vtanh.pop %v954
    %v998 = vtanh.pop %v974
    %v999 = vtanh.pop %v994
    %v1000 = vmul.f32 %v996, 0.5
    %v1001 = vadd.f32 %v1000, 0.5
    %v1002 = vmul.f32 %v997, 0.5
    %v1003 = vadd.f32 %v1002, 0.5
    %v1004 = vmul.f32 %v999, 0.5
    %v1005 = vadd.f32 %v1004, 0.5
    %v1006 = vmul.f32 %v1003, %v814
    %v1007 = vmul.f32 %v1001, %v998
    %v1008 = vadd.f32 %v1006, %v1007
    %v1009 = vtanh.pop %v1008
    %v1010 = vmul.f32 %v1005, %v1009
    %s1011 = scalar_lea.vmem [#allocation3], 8
    %v1012 = vld [vmem:[%s1011] sm:$0x3]
    %v1013 = vadd.f32 %v1012, %v914
    %1014 = vmatpush.msra.mxu0 %v170
    %1015 = vmatpush.msra.mxu0 %v166
    %1016 = vmatpush.msra.mxu0 %v162
    %1017 = vmatpush.msra.mxu0 %v158
    %1018 = vmatpush.msra.mxu0 %v154
    %1019 = vmatpush.msra.mxu0 %v150
    %1020 = vmatpush.msra.mxu0 %v146
    %1021 = vmatpush.msra.mxu0 %v142
    %1022 = vmatpush.msra.mxu0 %v138
    %1023 = vmatpush.msra.mxu0 %v134
    %1024 = vmatpush.msra.mxu0 %v130
    %1025 = vmatpush.msra.mxu0 %v126
    %1026 = vmatpush.msra.mxu0 %v122
    %1027 = vmatpush.msra.mxu0 %v118
    %1028 = vmatpush.msra.mxu0 %v114
    %1029 = vmatpush.msra.mxu0 %v110
    %1030 = vmatmul.f32.gmra.mxu0 %v1013
    %v1031 = vpop.f32.mrf.mxu0
    %v1032 = vadd.f32 %v90, %v1031
    %1033 = vdwg.mxu0
    %1034 = vmatpush.msra.mxu0 %v171
    %1035 = vmatpush.msra.mxu0 %v167
    %1036 = vmatpush.msra.mxu0 %v163
    %1037 = vmatpush.msra.mxu0 %v159
    %1038 = vmatpush.msra.mxu0 %v155
    %1039 = vmatpush.msra.mxu0 %v151
    %1040 = vmatpush.msra.mxu0 %v147
    %1041 = vmatpush.msra.mxu0 %v143
    %1042 = vmatpush.msra.mxu0 %v139
    %1043 = vmatpush.msra.mxu0 %v135
    %1044 = vmatpush.msra.mxu0 %v131
    %1045 = vmatpush.msra.mxu0 %v127
    %1046 = vmatpush.msra.mxu0 %v123
    %1047 = vmatpush.msra.mxu0 %v119
    %1048 = vmatpush.msra.mxu0 %v115
    %1049 = vmatpush.msra.mxu0 %v111
    %1050 = vmatmul.f32.gmra.mxu0 %v1013
    %v1051 = vpop.f32.mrf.mxu0
    %v1052 = vadd.f32 %v91, %v1051
    %1053 = vdwg.mxu0
    %1054 = vmatpush.msra.mxu0 %v172
    %1055 = vmatpush.msra.mxu0 %v168
    %1056 = vmatpush.msra.mxu0 %v164
    %1057 = vmatpush.msra.mxu0 %v160
    %1058 = vmatpush.msra.mxu0 %v156
    %1059 = vmatpush.msra.mxu0 %v152
    %1060 = vmatpush.msra.mxu0 %v148
    %1061 = vmatpush.msra.mxu0 %v144
    %1062 = vmatpush.msra.mxu0 %v140
    %1063 = vmatpush.msra.mxu0 %v136
    %1064 = vmatpush.msra.mxu0 %v132
    %1065 = vmatpush.msra.mxu0 %v128
    %1066 = vmatpush.msra.mxu0 %v124
    %1067 = vmatpush.msra.mxu0 %v120
    %1068 = vmatpush.msra.mxu0 %v116
    %1069 = vmatpush.msra.mxu0 %v112
    %1070 = vmatmul.f32.gmra.mxu0 %v1013
    %v1071 = vpop.f32.mrf.mxu0
    %v1072 = vadd.f32 %v92, %v1071
    %1073 = vdwg.mxu0
    %1074 = vmatpush.msra.mxu0 %v173
    %1075 = vmatpush.msra.mxu0 %v169
    %1076 = vmatpush.msra.mxu0 %v165
    %1077 = vmatpush.msra.mxu0 %v161
    %1078 = vmatpush.msra.mxu0 %v157
    %1079 = vmatpush.msra.mxu0 %v153
    %1080 = vmatpush.msra.mxu0 %v149
    %1081 = vmatpush.msra.mxu0 %v145
    %1082 = vmatpush.msra.mxu0 %v141
    %1083 = vmatpush.msra.mxu0 %v137
    %1084 = vmatpush.msra.mxu0 %v133
    %1085 = vmatpush.msra.mxu0 %v129
    %1086 = vmatpush.msra.mxu0 %v125
    %1087 = vmatpush.msra.mxu0 %v121
    %1088 = vmatpush.msra.mxu0 %v117
    %1089 = vmatpush.msra.mxu0 %v113
    %1090 = vmatmul.f32.gmra.mxu0 %v1013
    %v1091 = vpop.f32.mrf.mxu0
    %v1092 = vadd.f32 %v93, %v1091
    %1093 = vdwg.mxu0
    %v1094 = vtanh.pop %v1032
    %v1095 = vtanh.pop %v1052
    %v1096 = vtanh.pop %v1072
    %v1097 = vtanh.pop %v1092
    %v1098 = vmul.f32 %v1094, 0.5
    %v1099 = vadd.f32 %v1098, 0.5
    %v1100 = vmul.f32 %v1095, 0.5
    %v1101 = vadd.f32 %v1100, 0.5
    %v1102 = vmul.f32 %v1097, 0.5
    %v1103 = vadd.f32 %v1102, 0.5
    %v1104 = vmul.f32 %v1101, %v912
    %v1105 = vmul.f32 %v1099, %v1096
    %v1106 = vadd.f32 %v1104, %v1105
    %v1107 = vtanh.pop %v1106
    %v1108 = vmul.f32 %v1103, %v1107
    %v1109 = vadd.f32 %v1108, %v1010
    %1110 = vmatpush.msra.mxu0 %v330
    %1111 = vmatpush.msra.mxu0 %v326
    %1112 = vmatpush.msra.mxu0 %v322
    %1113 = vmatpush.msra.mxu0 %v318
    %1114 = vmatpush.msra.mxu0 %v314
    %1115 = vmatpush.msra.mxu0 %v310
    %1116 = vmatpush.msra.mxu0 %v306
    %1117 = vmatpush.msra.mxu0 %v302
    %1118 = vmatpush.msra.mxu0 %v298
    %1119 = vmatpush.msra.mxu0 %v294
    %1120 = vmatpush.msra.mxu0 %v290
    %1121 = vmatpush.msra.mxu0 %v286
    %1122 = vmatpush.msra.mxu0 %v282
    %1123 = vmatpush.msra.mxu0 %v278
    %1124 = vmatpush.msra.mxu0 %v274
    %1125 = vmatpush.msra.mxu0 %v270
    %1126 = vmatmul.f32.gmra.mxu0 %v1109
    %v1127 = vpop.f32.mrf.mxu0
    %v1128 = vadd.f32 %v100, %v1127
    %1129 = vdwg.mxu0
    %1130 = vmatpush.msra.mxu0 %v331
    %1131 = vmatpush.msra.mxu0 %v327
    %1132 = vmatpush.msra.mxu0 %v323
    %1133 = vmatpush.msra.mxu0 %v319
    %1134 = vmatpush.msra.mxu0 %v315
    %1135 = vmatpush.msra.mxu0 %v311
    %1136 = vmatpush.msra.mxu0 %v307
    %1137 = vmatpush.msra.mxu0 %v303
    %1138 = vmatpush.msra.mxu0 %v299
    %1139 = vmatpush.msra.mxu0 %v295
    %1140 = vmatpush.msra.mxu0 %v291
    %1141 = vmatpush.msra.mxu0 %v287
    %1142 = vmatpush.msra.mxu0 %v283
    %1143 = vmatpush.msra.mxu0 %v279
    %1144 = vmatpush.msra.mxu0 %v275
    %1145 = vmatpush.msra.mxu0 %v271
    %1146 = vmatmul.f32.gmra.mxu0 %v1109
    %v1147 = vpop.f32.mrf.mxu0
    %v1148 = vadd.f32 %v101, %v1147
    %1149 = vdwg.mxu0
    %1150 = vmatpush.msra.mxu0 %v332
    %1151 = vmatpush.msra.mxu0 %v328
    %1152 = vmatpush.msra.mxu0 %v324
    %1153 = vmatpush.msra.mxu0 %v320
    %1154 = vmatpush.msra.mxu0 %v316
    %1155 = vmatpush.msra.mxu0 %v312
    %1156 = vmatpush.msra.mxu0 %v308
    %1157 = vmatpush.msra.mxu0 %v304
    %1158 = vmatpush.msra.mxu0 %v300
    %1159 = vmatpush.msra.mxu0 %v296
    %1160 = vmatpush.msra.mxu0 %v292
    %1161 = vmatpush.msra.mxu0 %v288
    %1162 = vmatpush.msra.mxu0 %v284
    %1163 = vmatpush.msra.mxu0 %v280
    %1164 = vmatpush.msra.mxu0 %v276
    %1165 = vmatpush.msra.mxu0 %v272
    %1166 = vmatmul.f32.gmra.mxu0 %v1109
    %v1167 = vpop.f32.mrf.mxu0
    %v1168 = vadd.f32 %v102, %v1167
    %1169 = vdwg.mxu0
    %1170 = vmatpush.msra.mxu0 %v333
    %1171 = vmatpush.msra.mxu0 %v329
    %1172 = vmatpush.msra.mxu0 %v325
    %1173 = vmatpush.msra.mxu0 %v321
    %1174 = vmatpush.msra.mxu0 %v317
    %1175 = vmatpush.msra.mxu0 %v313
    %1176 = vmatpush.msra.mxu0 %v309
    %1177 = vmatpush.msra.mxu0 %v305
    %1178 = vmatpush.msra.mxu0 %v301
    %1179 = vmatpush.msra.mxu0 %v297
    %1180 = vmatpush.msra.mxu0 %v293
    %1181 = vmatpush.msra.mxu0 %v289
    %1182 = vmatpush.msra.mxu0 %v285
    %1183 = vmatpush.msra.mxu0 %v281
    %1184 = vmatpush.msra.mxu0 %v277
    %1185 = vmatpush.msra.mxu0 %v273
    %1186 = vmatmul.f32.gmra.mxu0 %v1109
    %v1187 = vpop.f32.mrf.mxu0
    %v1188 = vadd.f32 %v103, %v1187
    %1189 = vdwg.mxu0
    %v1190 = vtanh.pop %v1128
    %v1191 = vtanh.pop %v1148
    %v1192 = vtanh.pop %v1168
    %v1193 = vtanh.pop %v1188
    %v1194 = vmul.f32 %v1190, 0.5
    %v1195 = vadd.f32 %v1194, 0.5
    %v1196 = vmul.f32 %v1191, 0.5
    %v1197 = vadd.f32 %v1196, 0.5
    %v1198 = vmul.f32 %v1193, 0.5
    %v1199 = vadd.f32 %v1198, 0.5
    %v1200 = vmul.f32 %v1197, %v1008
    %v1201 = vmul.f32 %v1195, %v1192
    %v1202 = vadd.f32 %v1200, %v1201
    %v1203 = vtanh.pop %v1202
    %v1204 = vmul.f32 %v1199, %v1203
    %s1205 = scalar_lea.vmem [#allocation3], 10
    %v1206 = vld [vmem:[%s1205] sm:$0x3]
    %v1207 = vadd.f32 %v1206, %v1108
    %1208 = vmatpush.msra.mxu0 %v170
    %1209 = vmatpush.msra.mxu0 %v166
    %1210 = vmatpush.msra.mxu0 %v162
    %1211 = vmatpush.msra.mxu0 %v158
    %1212 = vmatpush.msra.mxu0 %v154
    %1213 = vmatpush.msra.mxu0 %v150
    %1214 = vmatpush.msra.mxu0 %v146
    %1215 = vmatpush.msra.mxu0 %v142
    %1216 = vmatpush.msra.mxu0 %v138
    %1217 = vmatpush.msra.mxu0 %v134
    %1218 = vmatpush.msra.mxu0 %v130
    %1219 = vmatpush.msra.mxu0 %v126
    %1220 = vmatpush.msra.mxu0 %v122
    %1221 = vmatpush.msra.mxu0 %v118
    %1222 = vmatpush.msra.mxu0 %v114
    %1223 = vmatpush.msra.mxu0 %v110
    %1224 = vmatmul.f32.gmra.mxu0 %v1207
    %v1225 = vpop.f32.mrf.mxu0
    %v1226 = vadd.f32 %v90, %v1225
    %1227 = vdwg.mxu0
    %1228 = vmatpush.msra.mxu0 %v171
    %1229 = vmatpush.msra.mxu0 %v167
    %1230 = vmatpush.msra.mxu0 %v163
    %1231 = vmatpush.msra.mxu0 %v159
    %1232 = vmatpush.msra.mxu0 %v155
    %1233 = vmatpush.msra.mxu0 %v151
    %1234 = vmatpush.msra.mxu0 %v147
    %1235 = vmatpush.msra.mxu0 %v143
    %1236 = vmatpush.msra.mxu0 %v139
    %1237 = vmatpush.msra.mxu0 %v135
    %1238 = vmatpush.msra.mxu0 %v131
    %1239 = vmatpush.msra.mxu0 %v127
    %1240 = vmatpush.msra.mxu0 %v123
    %1241 = vmatpush.msra.mxu0 %v119
    %1242 = vmatpush.msra.mxu0 %v115
    %1243 = vmatpush.msra.mxu0 %v111
    %1244 = vmatmul.f32.gmra.mxu0 %v1207
    %v1245 = vpop.f32.mrf.mxu0
    %v1246 = vadd.f32 %v91, %v1245
    %1247 = vdwg.mxu0
    %1248 = vmatpush.msra.mxu0 %v172
    %1249 = vmatpush.msra.mxu0 %v168
    %1250 = vmatpush.msra.mxu0 %v164
    %1251 = vmatpush.msra.mxu0 %v160
    %1252 = vmatpush.msra.mxu0 %v156
    %1253 = vmatpush.msra.mxu0 %v152
    %1254 = vmatpush.msra.mxu0 %v148
    %1255 = vmatpush.msra.mxu0 %v144
    %1256 = vmatpush.msra.mxu0 %v140
    %1257 = vmatpush.msra.mxu0 %v136
    %1258 = vmatpush.msra.mxu0 %v132
    %1259 = vmatpush.msra.mxu0 %v128
    %1260 = vmatpush.msra.mxu0 %v124
    %1261 = vmatpush.msra.mxu0 %v120
    %1262 = vmatpush.msra.mxu0 %v116
    %1263 = vmatpush.msra.mxu0 %v112
    %1264 = vmatmul.f32.gmra.mxu0 %v1207
    %v1265 = vpop.f32.mrf.mxu0
    %v1266 = vadd.f32 %v92, %v1265
    %1267 = vdwg.mxu0
    %1268 = vmatpush.msra.mxu0 %v173
    %1269 = vmatpush.msra.mxu0 %v169
    %1270 = vmatpush.msra.mxu0 %v165
    %1271 = vmatpush.msra.mxu0 %v161
    %1272 = vmatpush.msra.mxu0 %v157
    %1273 = vmatpush.msra.mxu0 %v153
    %1274 = vmatpush.msra.mxu0 %v149
    %1275 = vmatpush.msra.mxu0 %v145
    %1276 = vmatpush.msra.mxu0 %v141
    %1277 = vmatpush.msra.mxu0 %v137
    %1278 = vmatpush.msra.mxu0 %v133
    %1279 = vmatpush.msra.mxu0 %v129
    %1280 = vmatpush.msra.mxu0 %v125
    %1281 = vmatpush.msra.mxu0 %v121
    %1282 = vmatpush.msra.mxu0 %v117
    %1283 = vmatpush.msra.mxu0 %v113
    %1284 = vmatmul.f32.gmra.mxu0 %v1207
    %v1285 = vpop.f32.mrf.mxu0
    %v1286 = vadd.f32 %v93, %v1285
    %1287 = vdwg.mxu0
    %v1288 = vtanh.pop %v1226
    %v1289 = vtanh.pop %v1246
    %v1290 = vtanh.pop %v1266
    %v1291 = vtanh.pop %v1286
    %v1292 = vmul.f32 %v1288, 0.5
    %v1293 = vadd.f32 %v1292, 0.5
    %v1294 = vmul.f32 %v1289, 0.5
    %v1295 = vadd.f32 %v1294, 0.5
    %v1296 = vmul.f32 %v1291, 0.5
    %v1297 = vadd.f32 %v1296, 0.5
    %v1298 = vmul.f32 %v1295, %v1106
    %v1299 = vmul.f32 %v1293, %v1290
    %v1300 = vadd.f32 %v1298, %v1299
    %v1301 = vtanh.pop %v1300
    %v1302 = vmul.f32 %v1297, %v1301
    %v1303 = vadd.f32 %v1302, %v1204
    %1304 = vmatpush.msra.mxu0 %v330
    %1305 = vmatpush.msra.mxu0 %v326
    %1306 = vmatpush.msra.mxu0 %v322
    %1307 = vmatpush.msra.mxu0 %v318
    %1308 = vmatpush.msra.mxu0 %v314
    %1309 = vmatpush.msra.mxu0 %v310
    %1310 = vmatpush.msra.mxu0 %v306
    %1311 = vmatpush.msra.mxu0 %v302
    %1312 = vmatpush.msra.mxu0 %v298
    %1313 = vmatpush.msra.mxu0 %v294
    %1314 = vmatpush.msra.mxu0 %v290
    %1315 = vmatpush.msra.mxu0 %v286
    %1316 = vmatpush.msra.mxu0 %v282
    %1317 = vmatpush.msra.mxu0 %v278
    %1318 = vmatpush.msra.mxu0 %v274
    %1319 = vmatpush.msra.mxu0 %v270
    %1320 = vmatmul.f32.gmra.mxu0 %v1303
    %v1321 = vpop.f32.mrf.mxu0
    %v1322 = vadd.f32 %v100, %v1321
    %1323 = vdwg.mxu0
    %1324 = vmatpush.msra.mxu0 %v331
    %1325 = vmatpush.msra.mxu0 %v327
    %1326 = vmatpush.msra.mxu0 %v323
    %1327 = vmatpush.msra.mxu0 %v319
    %1328 = vmatpush.msra.mxu0 %v315
    %1329 = vmatpush.msra.mxu0 %v311
    %1330 = vmatpush.msra.mxu0 %v307
    %1331 = vmatpush.msra.mxu0 %v303
    %1332 = vmatpush.msra.mxu0 %v299
    %1333 = vmatpush.msra.mxu0 %v295
    %1334 = vmatpush.msra.mxu0 %v291
    %1335 = vmatpush.msra.mxu0 %v287
    %1336 = vmatpush.msra.mxu0 %v283
    %1337 = vmatpush.msra.mxu0 %v279
    %1338 = vmatpush.msra.mxu0 %v275
    %1339 = vmatpush.msra.mxu0 %v271
    %1340 = vmatmul.f32.gmra.mxu0 %v1303
    %v1341 = vpop.f32.mrf.mxu0
    %v1342 = vadd.f32 %v101, %v1341
    %1343 = vdwg.mxu0
    %1344 = vmatpush.msra.mxu0 %v332
    %1345 = vmatpush.msra.mxu0 %v328
    %1346 = vmatpush.msra.mxu0 %v324
    %1347 = vmatpush.msra.mxu0 %v320
    %1348 = vmatpush.msra.mxu0 %v316
    %1349 = vmatpush.msra.mxu0 %v312
    %1350 = vmatpush.msra.mxu0 %v308
    %1351 = vmatpush.msra.mxu0 %v304
    %1352 = vmatpush.msra.mxu0 %v300
    %1353 = vmatpush.msra.mxu0 %v296
    %1354 = vmatpush.msra.mxu0 %v292
    %1355 = vmatpush.msra.mxu0 %v288
    %1356 = vmatpush.msra.mxu0 %v284
    %1357 = vmatpush.msra.mxu0 %v280
    %1358 = vmatpush.msra.mxu0 %v276
    %1359 = vmatpush.msra.mxu0 %v272
    %1360 = vmatmul.f32.gmra.mxu0 %v1303
    %v1361 = vpop.f32.mrf.mxu0
    %v1362 = vadd.f32 %v102, %v1361
    %1363 = vdwg.mxu0
    %1364 = vmatpush.msra.mxu0 %v333
    %1365 = vmatpush.msra.mxu0 %v329
    %1366 = vmatpush.msra.mxu0 %v325
    %1367 = vmatpush.msra.mxu0 %v321
    %1368 = vmatpush.msra.mxu0 %v317
    %1369 = vmatpush.msra.mxu0 %v313
    %1370 = vmatpush.msra.mxu0 %v309
    %1371 = vmatpush.msra.mxu0 %v305
    %1372 = vmatpush.msra.mxu0 %v301
    %1373 = vmatpush.msra.mxu0 %v297
    %1374 = vmatpush.msra.mxu0 %v293
    %1375 = vmatpush.msra.mxu0 %v289
    %1376 = vmatpush.msra.mxu0 %v285
    %1377 = vmatpush.msra.mxu0 %v281
    %1378 = vmatpush.msra.mxu0 %v277
    %1379 = vmatpush.msra.mxu0 %v273
    %1380 = vmatmul.f32.gmra.mxu0 %v1303
    %v1381 = vpop.f32.mrf.mxu0
    %v1382 = vadd.f32 %v103, %v1381
    %1383 = vdwg.mxu0
    %v1384 = vtanh.pop %v1322
    %v1385 = vtanh.pop %v1342
    %v1386 = vtanh.pop %v1362
    %v1387 = vtanh.pop %v1382
    %v1388 = vmul.f32 %v1384, 0.5
    %v1389 = vadd.f32 %v1388, 0.5
    %v1390 = vmul.f32 %v1385, 0.5
    %v1391 = vadd.f32 %v1390, 0.5
    %v1392 = vmul.f32 %v1387, 0.5
    %v1393 = vadd.f32 %v1392, 0.5
    %v1394 = vmul.f32 %v1391, %v1202
    %v1395 = vmul.f32 %v1389, %v1386
    %v1396 = vadd.f32 %v1394, %v1395
    %v1397 = vtanh.pop %v1396
    %v1398 = vmul.f32 %v1393, %v1397
    %s1399 = scalar_lea.vmem [#allocation3], 12
    %v1400 = vld [vmem:[%s1399] sm:$0x3]
    %v1401 = vadd.f32 %v1400, %v1302
    %1402 = vmatpush.msra.mxu0 %v170
    %1403 = vmatpush.msra.mxu0 %v166
    %1404 = vmatpush.msra.mxu0 %v162
    %1405 = vmatpush.msra.mxu0 %v158
    %1406 = vmatpush.msra.mxu0 %v154
    %1407 = vmatpush.msra.mxu0 %v150
    %1408 = vmatpush.msra.mxu0 %v146
    %1409 = vmatpush.msra.mxu0 %v142
    %1410 = vmatpush.msra.mxu0 %v138
    %1411 = vmatpush.msra.mxu0 %v134
    %1412 = vmatpush.msra.mxu0 %v130
    %1413 = vmatpush.msra.mxu0 %v126
    %1414 = vmatpush.msra.mxu0 %v122
    %1415 = vmatpush.msra.mxu0 %v118
    %1416 = vmatpush.msra.mxu0 %v114
    %1417 = vmatpush.msra.mxu0 %v110
    %1418 = vmatmul.f32.gmra.mxu0 %v1401
    %v1419 = vpop.f32.mrf.mxu0
    %v1420 = vadd.f32 %v90, %v1419
    %1421 = vdwg.mxu0
    %1422 = vmatpush.msra.mxu0 %v171
    %1423 = vmatpush.msra.mxu0 %v167
    %1424 = vmatpush.msra.mxu0 %v163
    %1425 = vmatpush.msra.mxu0 %v159
    %1426 = vmatpush.msra.mxu0 %v155
    %1427 = vmatpush.msra.mxu0 %v151
    %1428 = vmatpush.msra.mxu0 %v147
    %1429 = vmatpush.msra.mxu0 %v143
    %1430 = vmatpush.msra.mxu0 %v139
    %1431 = vmatpush.msra.mxu0 %v135
    %1432 = vmatpush.msra.mxu0 %v131
    %1433 = vmatpush.msra.mxu0 %v127
    %1434 = vmatpush.msra.mxu0 %v123
    %1435 = vmatpush.msra.mxu0 %v119
    %1436 = vmatpush.msra.mxu0 %v115
    %1437 = vmatpush.msra.mxu0 %v111
    %1438 = vmatmul.f32.gmra.mxu0 %v1401
    %v1439 = vpop.f32.mrf.mxu0
    %v1440 = vadd.f32 %v91, %v1439
    %1441 = vdwg.mxu0
    %1442 = vmatpush.msra.mxu0 %v172
    %1443 = vmatpush.msra.mxu0 %v168
    %1444 = vmatpush.msra.mxu0 %v164
    %1445 = vmatpush.msra.mxu0 %v160
    %1446 = vmatpush.msra.mxu0 %v156
    %1447 = vmatpush.msra.mxu0 %v152
    %1448 = vmatpush.msra.mxu0 %v148
    %1449 = vmatpush.msra.mxu0 %v144
    %1450 = vmatpush.msra.mxu0 %v140
    %1451 = vmatpush.msra.mxu0 %v136
    %1452 = vmatpush.msra.mxu0 %v132
    %1453 = vmatpush.msra.mxu0 %v128
    %1454 = vmatpush.msra.mxu0 %v124
    %1455 = vmatpush.msra.mxu0 %v120
    %1456 = vmatpush.msra.mxu0 %v116
    %1457 = vmatpush.msra.mxu0 %v112
    %1458 = vmatmul.f32.gmra.mxu0 %v1401
    %v1459 = vpop.f32.mrf.mxu0
    %v1460 = vadd.f32 %v92, %v1459
    %1461 = vdwg.mxu0
    %1462 = vmatpush.msra.mxu0 %v173
    %1463 = vmatpush.msra.mxu0 %v169
    %1464 = vmatpush.msra.mxu0 %v165
    %1465 = vmatpush.msra.mxu0 %v161
    %1466 = vmatpush.msra.mxu0 %v157
    %1467 = vmatpush.msra.mxu0 %v153
    %1468 = vmatpush.msra.mxu0 %v149
    %1469 = vmatpush.msra.mxu0 %v145
    %1470 = vmatpush.msra.mxu0 %v141
    %1471 = vmatpush.msra.mxu0 %v137
    %1472 = vmatpush.msra.mxu0 %v133
    %1473 = vmatpush.msra.mxu0 %v129
    %1474 = vmatpush.msra.mxu0 %v125
    %1475 = vmatpush.msra.mxu0 %v121
    %1476 = vmatpush.msra.mxu0 %v117
    %1477 = vmatpush.msra.mxu0 %v113
    %1478 = vmatmul.f32.gmra.mxu0 %v1401
    %v1479 = vpop.f32.mrf.mxu0
    %v1480 = vadd.f32 %v93, %v1479
    %1481 = vdwg.mxu0
    %v1482 = vtanh.pop %v1420
    %v1483 = vtanh.pop %v1440
    %v1484 = vtanh.pop %v1460
    %v1485 = vtanh.pop %v1480
    %v1486 = vmul.f32 %v1482, 0.5
    %v1487 = vadd.f32 %v1486, 0.5
    %v1488 = vmul.f32 %v1483, 0.5
    %v1489 = vadd.f32 %v1488, 0.5
    %v1490 = vmul.f32 %v1485, 0.5
    %v1491 = vadd.f32 %v1490, 0.5
    %v1492 = vmul.f32 %v1489, %v1300
    %v1493 = vmul.f32 %v1487, %v1484
    %v1494 = vadd.f32 %v1492, %v1493
    %v1495 = vtanh.pop %v1494
    %v1496 = vmul.f32 %v1491, %v1495
    %v1497 = vadd.f32 %v1496, %v1398
    %1498 = vmatpush.msra.mxu0 %v330
    %1499 = vmatpush.msra.mxu0 %v326
    %1500 = vmatpush.msra.mxu0 %v322
    %1501 = vmatpush.msra.mxu0 %v318
    %1502 = vmatpush.msra.mxu0 %v314
    %1503 = vmatpush.msra.mxu0 %v310
    %1504 = vmatpush.msra.mxu0 %v306
    %1505 = vmatpush.msra.mxu0 %v302
    %1506 = vmatpush.msra.mxu0 %v298
    %1507 = vmatpush.msra.mxu0 %v294
    %1508 = vmatpush.msra.mxu0 %v290
    %1509 = vmatpush.msra.mxu0 %v286
    %1510 = vmatpush.msra.mxu0 %v282
    %1511 = vmatpush.msra.mxu0 %v278
    %1512 = vmatpush.msra.mxu0 %v274
    %1513 = vmatpush.msra.mxu0 %v270
    %1514 = vmatmul.f32.gmra.mxu0 %v1497
    %v1515 = vpop.f32.mrf.mxu0
    %v1516 = vadd.f32 %v100, %v1515
    %1517 = vdwg.mxu0
    %1518 = vmatpush.msra.mxu0 %v331
    %1519 = vmatpush.msra.mxu0 %v327
    %1520 = vmatpush.msra.mxu0 %v323
    %1521 = vmatpush.msra.mxu0 %v319
    %1522 = vmatpush.msra.mxu0 %v315
    %1523 = vmatpush.msra.mxu0 %v311
    %1524 = vmatpush.msra.mxu0 %v307
    %1525 = vmatpush.msra.mxu0 %v303
    %1526 = vmatpush.msra.mxu0 %v299
    %1527 = vmatpush.msra.mxu0 %v295
    %1528 = vmatpush.msra.mxu0 %v291
    %1529 = vmatpush.msra.mxu0 %v287
    %1530 = vmatpush.msra.mxu0 %v283
    %1531 = vmatpush.msra.mxu0 %v279
    %1532 = vmatpush.msra.mxu0 %v275
    %1533 = vmatpush.msra.mxu0 %v271
    %1534 = vmatmul.f32.gmra.mxu0 %v1497
    %v1535 = vpop.f32.mrf.mxu0
    %v1536 = vadd.f32 %v101, %v1535
    %1537 = vdwg.mxu0
    %1538 = vmatpush.msra.mxu0 %v332
    %1539 = vmatpush.msra.mxu0 %v328
    %1540 = vmatpush.msra.mxu0 %v324
    %1541 = vmatpush.msra.mxu0 %v320
    %1542 = vmatpush.msra.mxu0 %v316
    %1543 = vmatpush.msra.mxu0 %v312
    %1544 = vmatpush.msra.mxu0 %v308
    %1545 = vmatpush.msra.mxu0 %v304
    %1546 = vmatpush.msra.mxu0 %v300
    %1547 = vmatpush.msra.mxu0 %v296
    %1548 = vmatpush.msra.mxu0 %v292
    %1549 = vmatpush.msra.mxu0 %v288
    %1550 = vmatpush.msra.mxu0 %v284
    %1551 = vmatpush.msra.mxu0 %v280
    %1552 = vmatpush.msra.mxu0 %v276
    %1553 = vmatpush.msra.mxu0 %v272
    %1554 = vmatmul.f32.gmra.mxu0 %v1497
    %v1555 = vpop.f32.mrf.mxu0
    %v1556 = vadd.f32 %v102, %v1555
    %1557 = vdwg.mxu0
    %1558 = vmatpush.msra.mxu0 %v333
    %1559 = vmatpush.msra.mxu0 %v329
    %1560 = vmatpush.msra.mxu0 %v325
    %1561 = vmatpush.msra.mxu0 %v321
    %1562 = vmatpush.msra.mxu0 %v317
    %1563 = vmatpush.msra.mxu0 %v313
    %1564 = vmatpush.msra.mxu0 %v309
    %1565 = vmatpush.msra.mxu0 %v305
    %1566 = vmatpush.msra.mxu0 %v301
    %1567 = vmatpush.msra.mxu0 %v297
    %1568 = vmatpush.msra.mxu0 %v293
    %1569 = vmatpush.msra.mxu0 %v289
    %1570 = vmatpush.msra.mxu0 %v285
    %1571 = vmatpush.msra.mxu0 %v281
    %1572 = vmatpush.msra.mxu0 %v277
    %1573 = vmatpush.msra.mxu0 %v273
    %1574 = vmatmul.f32.gmra.mxu0 %v1497
    %v1575 = vpop.f32.mrf.mxu0
    %v1576 = vadd.f32 %v103, %v1575
    %1577 = vdwg.mxu0
    %v1578 = vtanh.pop %v1516
    %v1579 = vtanh.pop %v1536
    %v1580 = vtanh.pop %v1556
    %v1581 = vtanh.pop %v1576
    %v1582 = vmul.f32 %v1578, 0.5
    %v1583 = vadd.f32 %v1582, 0.5
    %v1584 = vmul.f32 %v1579, 0.5
    %v1585 = vadd.f32 %v1584, 0.5
    %v1586 = vmul.f32 %v1581, 0.5
    %v1587 = vadd.f32 %v1586, 0.5
    %v1588 = vmul.f32 %v1585, %v1396
    %v1589 = vmul.f32 %v1583, %v1580
    %v1590 = vadd.f32 %v1588, %v1589
    %v1591 = vtanh.pop %v1590
    %v1592 = vmul.f32 %v1587, %v1591
    %s1593 = scalar_lea.vmem [#allocation3], 14
    %v1594 = vld [vmem:[%s1593] sm:$0x3]
    %v1595 = vadd.f32 %v1594, %v1496
    %1596 = vmatpush.msra.mxu0 %v170
    %1597 = vmatpush.msra.mxu0 %v166
    %1598 = vmatpush.msra.mxu0 %v162
    %1599 = vmatpush.msra.mxu0 %v158
    %1600 = vmatpush.msra.mxu0 %v154
    %1601 = vmatpush.msra.mxu0 %v150
    %1602 = vmatpush.msra.mxu0 %v146
    %1603 = vmatpush.msra.mxu0 %v142
    %1604 = vmatpush.msra.mxu0 %v138
    %1605 = vmatpush.msra.mxu0 %v134
    %1606 = vmatpush.msra.mxu0 %v130
    %1607 = vmatpush.msra.mxu0 %v126
    %1608 = vmatpush.msra.mxu0 %v122
    %1609 = vmatpush.msra.mxu0 %v118
    %1610 = vmatpush.msra.mxu0 %v114
    %1611 = vmatpush.msra.mxu0 %v110
    %1612 = vmatmul.f32.gmra.mxu0 %v1595
    %v1613 = vpop.f32.mrf.mxu0
    %v1614 = vadd.f32 %v90, %v1613
    %1615 = vdwg.mxu0
    %1616 = vmatpush.msra.mxu0 %v171
    %1617 = vmatpush.msra.mxu0 %v167
    %1618 = vmatpush.msra.mxu0 %v163
    %1619 = vmatpush.msra.mxu0 %v159
    %1620 = vmatpush.msra.mxu0 %v155
    %1621 = vmatpush.msra.mxu0 %v151
    %1622 = vmatpush.msra.mxu0 %v147
    %1623 = vmatpush.msra.mxu0 %v143
    %1624 = vmatpush.msra.mxu0 %v139
    %1625 = vmatpush.msra.mxu0 %v135
    %1626 = vmatpush.msra.mxu0 %v131
    %1627 = vmatpush.msra.mxu0 %v127
    %1628 = vmatpush.msra.mxu0 %v123
    %1629 = vmatpush.msra.mxu0 %v119
    %1630 = vmatpush.msra.mxu0 %v115
    %1631 = vmatpush.msra.mxu0 %v111
    %1632 = vmatmul.f32.gmra.mxu0 %v1595
    %v1633 = vpop.f32.mrf.mxu0
    %v1634 = vadd.f32 %v91, %v1633
    %1635 = vdwg.mxu0
    %1636 = vmatpush.msra.mxu0 %v172
    %1637 = vmatpush.msra.mxu0 %v168
    %1638 = vmatpush.msra.mxu0 %v164
    %1639 = vmatpush.msra.mxu0 %v160
    %1640 = vmatpush.msra.mxu0 %v156
    %1641 = vmatpush.msra.mxu0 %v152
    %1642 = vmatpush.msra.mxu0 %v148
    %1643 = vmatpush.msra.mxu0 %v144
    %1644 = vmatpush.msra.mxu0 %v140
    %1645 = vmatpush.msra.mxu0 %v136
    %1646 = vmatpush.msra.mxu0 %v132
    %1647 = vmatpush.msra.mxu0 %v128
    %1648 = vmatpush.msra.mxu0 %v124
    %1649 = vmatpush.msra.mxu0 %v120
    %1650 = vmatpush.msra.mxu0 %v116
    %1651 = vmatpush.msra.mxu0 %v112
    %1652 = vmatmul.f32.gmra.mxu0 %v1595
    %v1653 = vpop.f32.mrf.mxu0
    %v1654 = vadd.f32 %v92, %v1653
    %1655 = vdwg.mxu0
    %1656 = vmatpush.msra.mxu0 %v173
    %1657 = vmatpush.msra.mxu0 %v169
    %1658 = vmatpush.msra.mxu0 %v165
    %1659 = vmatpush.msra.mxu0 %v161
    %1660 = vmatpush.msra.mxu0 %v157
    %1661 = vmatpush.msra.mxu0 %v153
    %1662 = vmatpush.msra.mxu0 %v149
    %1663 = vmatpush.msra.mxu0 %v145
    %1664 = vmatpush.msra.mxu0 %v141
    %1665 = vmatpush.msra.mxu0 %v137
    %1666 = vmatpush.msra.mxu0 %v133
    %1667 = vmatpush.msra.mxu0 %v129
    %1668 = vmatpush.msra.mxu0 %v125
    %1669 = vmatpush.msra.mxu0 %v121
    %1670 = vmatpush.msra.mxu0 %v117
    %1671 = vmatpush.msra.mxu0 %v113
    %1672 = vmatmul.f32.gmra.mxu0 %v1595
    %v1673 = vpop.f32.mrf.mxu0
    %v1674 = vadd.f32 %v93, %v1673
    %1675 = vdwg.mxu0
    %v1676 = vtanh.pop %v1614
    %v1677 = vtanh.pop %v1634
    %v1678 = vtanh.pop %v1654
    %v1679 = vtanh.pop %v1674
    %v1680 = vmul.f32 %v1676, 0.5
    %v1681 = vadd.f32 %v1680, 0.5
    %v1682 = vmul.f32 %v1677, 0.5
    %v1683 = vadd.f32 %v1682, 0.5
    %v1684 = vmul.f32 %v1679, 0.5
    %v1685 = vadd.f32 %v1684, 0.5
    %v1686 = vmul.f32 %v1683, %v1494
    %v1687 = vmul.f32 %v1681, %v1678
    %v1688 = vadd.f32 %v1686, %v1687
    %v1689 = vtanh.pop %v1688
    %v1690 = vmul.f32 %v1685, %v1689
    %v1691 = vadd.f32 %v1690, %v1592
    %1692 = vmatpush.msra.mxu0 %v330
    %1693 = vmatpush.msra.mxu0 %v326
    %1694 = vmatpush.msra.mxu0 %v322
    %1695 = vmatpush.msra.mxu0 %v318
    %1696 = vmatpush.msra.mxu0 %v314
    %1697 = vmatpush.msra.mxu0 %v310
    %1698 = vmatpush.msra.mxu0 %v306
    %1699 = vmatpush.msra.mxu0 %v302
    %1700 = vmatpush.msra.mxu0 %v298
    %1701 = vmatpush.msra.mxu0 %v294
    %1702 = vmatpush.msra.mxu0 %v290
    %1703 = vmatpush.msra.mxu0 %v286
    %1704 = vmatpush.msra.mxu0 %v282
    %1705 = vmatpush.msra.mxu0 %v278
    %1706 = vmatpush.msra.mxu0 %v274
    %1707 = vmatpush.msra.mxu0 %v270
    %1708 = vmatmul.f32.gmra.mxu0 %v1691
    %v1709 = vpop.f32.mrf.mxu0
    %v1710 = vadd.f32 %v100, %v1709
    %1711 = vdwg.mxu0
    %1712 = vmatpush.msra.mxu0 %v331
    %1713 = vmatpush.msra.mxu0 %v327
    %1714 = vmatpush.msra.mxu0 %v323
    %1715 = vmatpush.msra.mxu0 %v319
    %1716 = vmatpush.msra.mxu0 %v315
    %1717 = vmatpush.msra.mxu0 %v311
    %1718 = vmatpush.msra.mxu0 %v307
    %1719 = vmatpush.msra.mxu0 %v303
    %1720 = vmatpush.msra.mxu0 %v299
    %1721 = vmatpush.msra.mxu0 %v295
    %1722 = vmatpush.msra.mxu0 %v291
    %1723 = vmatpush.msra.mxu0 %v287
    %1724 = vmatpush.msra.mxu0 %v283
    %1725 = vmatpush.msra.mxu0 %v279
    %1726 = vmatpush.msra.mxu0 %v275
    %1727 = vmatpush.msra.mxu0 %v271
    %1728 = vmatmul.f32.gmra.mxu0 %v1691
    %v1729 = vpop.f32.mrf.mxu0
    %v1730 = vadd.f32 %v101, %v1729
    %1731 = vdwg.mxu0
    %1732 = vmatpush.msra.mxu0 %v332
    %1733 = vmatpush.msra.mxu0 %v328
    %1734 = vmatpush.msra.mxu0 %v324
    %1735 = vmatpush.msra.mxu0 %v320
    %1736 = vmatpush.msra.mxu0 %v316
    %1737 = vmatpush.msra.mxu0 %v312
    %1738 = vmatpush.msra.mxu0 %v308
    %1739 = vmatpush.msra.mxu0 %v304
    %1740 = vmatpush.msra.mxu0 %v300
    %1741 = vmatpush.msra.mxu0 %v296
    %1742 = vmatpush.msra.mxu0 %v292
    %1743 = vmatpush.msra.mxu0 %v288
    %1744 = vmatpush.msra.mxu0 %v284
    %1745 = vmatpush.msra.mxu0 %v280
    %1746 = vmatpush.msra.mxu0 %v276
    %1747 = vmatpush.msra.mxu0 %v272
    %1748 = vmatmul.f32.gmra.mxu0 %v1691
    %v1749 = vpop.f32.mrf.mxu0
    %v1750 = vadd.f32 %v102, %v1749
    %1751 = vdwg.mxu0
    %1752 = vmatpush.msra.mxu0 %v333
    %1753 = vmatpush.msra.mxu0 %v329
    %1754 = vmatpush.msra.mxu0 %v325
    %1755 = vmatpush.msra.mxu0 %v321
    %1756 = vmatpush.msra.mxu0 %v317
    %1757 = vmatpush.msra.mxu0 %v313
    %1758 = vmatpush.msra.mxu0 %v309
    %1759 = vmatpush.msra.mxu0 %v305
    %1760 = vmatpush.msra.mxu0 %v301
    %1761 = vmatpush.msra.mxu0 %v297
    %1762 = vmatpush.msra.mxu0 %v293
    %1763 = vmatpush.msra.mxu0 %v289
    %1764 = vmatpush.msra.mxu0 %v285
    %1765 = vmatpush.msra.mxu0 %v281
    %1766 = vmatpush.msra.mxu0 %v277
    %1767 = vmatpush.msra.mxu0 %v273
    %1768 = vmatmul.f32.gmra.mxu0 %v1691
    %v1769 = vpop.f32.mrf.mxu0
    %v1770 = vadd.f32 %v103, %v1769
    %1771 = vdwg.mxu0
    %v1772 = vtanh.pop %v1710
    %v1773 = vtanh.pop %v1730
    %v1774 = vtanh.pop %v1750
    %v1775 = vtanh.pop %v1770
    %v1776 = vmul.f32 %v1772, 0.5
    %v1777 = vadd.f32 %v1776, 0.5
    %v1778 = vmul.f32 %v1773, 0.5
    %v1779 = vadd.f32 %v1778, 0.5
    %v1780 = vmul.f32 %v1775, 0.5
    %v1781 = vadd.f32 %v1780, 0.5
    %v1782 = vmul.f32 %v1779, %v1590
    %v1783 = vmul.f32 %v1777, %v1774
    %v1784 = vadd.f32 %v1782, %v1783
    %v1785 = vtanh.pop %v1784
    %v1786 = vmul.f32 %v1781, %v1785
    %v1787 = vld [vmem:[%s5] sm:$0x1]
    %v1789 = vperm.slane %v1787, 0
    %v1791 = vmul.f32 %v1786, %v1789
    %vm1792 = vcmask 1041408
    %v1793 = vsel %vm1792, %v1791, 0.0
    %1794 = vadd.xlane.f32.xlu0 %v1793
    %v1795 = vpop.xlane.xlu0 %1794
    %s1796 = sld [smem:[#allocation2]]
    %v1797 = vstv %s1796
    %v1798 = vadd.f32 %v1795, %v1797
    %vm1799 = vcmask 1024
    %1800 = vst.msk [vmem:[%s7] sm:$0x3] %vm1799, %v1798
    // Predicated region
    $region46: #{tpu_custom_call.1} parent=1 // pred_check
      _
    $region47: #{tpu_custom_call.1} parent=1 // pred_check_branch
      %1802 = sbr.rel (0) target = $region49
    $region48: #{tpu_custom_call.1} parent=1 // pred_region
      _
    $region49: #{tpu_custom_call.1} parent=1 // pred_fallthru
      _
    // Predicated region
    $region50: #{tpu_custom_call.1} parent=1 // pred_check
      _
    $region51: #{tpu_custom_call.1} parent=1 // pred_check_branch
      %1804 = sbr.rel (0) target = $region53
    $region52: #{tpu_custom_call.1} parent=1 // pred_region
      _
    $region53: #{tpu_custom_call.1} parent=1 // pred_fallthru
      _
    %1805 = vsyncpa [#allocation4], 1
    %1806 = vsyncpa [#allocation6], 1
    %1807 = vsyncpa [#allocation9], 1

</llo_original>
